<compile_context>
chip_gen: v5e
topology: v5e:2x2
jax: 0.10.0
libtpu: 0.0.40
codegen_flags: <defaults>
</compile_context>

<pallas_src>
import jax
import jax.numpy as jnp
from jax.experimental import pallas as pl
from jax.experimental.pallas import tpu as pltpu


def _layernorm_f32(h, w, b, eps=1e-5):
    h = h.astype(jnp.float32)
    mu = jnp.mean(h, axis=-1, keepdims=True)
    var = jnp.mean((h - mu) ** 2, axis=-1, keepdims=True)
    return (h - mu) * jax.lax.rsqrt(var + eps) * w + b


# ---------------------------------------------------------------------------
# Kernel 1: skip_linear + norm1 + q/k/v projections over (tm, C) token tiles.
# ---------------------------------------------------------------------------
def _pre_attn_kernel(x_ref, skip_ref,
                     wsx_ref, wss_ref, wsb_ref,
                     n1w_ref, n1b_ref,
                     wq_ref, wk_ref, wv_ref,
                     xout_ref, q_ref, k_ref, v_ref):
    cdt = wq_ref.dtype                     # matmul operand dtype (bf16 or f32)
    # skip_linear: cat([x, skip], -1) @ W.T + b == x @ Wx + skip @ Wskip + b
    x = (jnp.dot(x_ref[...], wsx_ref[...], preferred_element_type=jnp.float32)
         + jnp.dot(skip_ref[...], wss_ref[...], preferred_element_type=jnp.float32)
         + wsb_ref[...])
    xout_ref[...] = x.astype(xout_ref.dtype)

    h = _layernorm_f32(x, n1w_ref[...], n1b_ref[...]).astype(cdt)
    # Wq already carries the 1/sqrt(D) attention scale (folded on host).
    q_ref[...] = jnp.dot(h, wq_ref[...],
                         preferred_element_type=jnp.float32).astype(q_ref.dtype)
    k_ref[...] = jnp.dot(h, wk_ref[...],
                         preferred_element_type=jnp.float32).astype(k_ref.dtype)
    v_ref[...] = jnp.dot(h, wv_ref[...],
                         preferred_element_type=jnp.float32).astype(v_ref.dtype)


# ---------------------------------------------------------------------------
# Kernel 2: attention over grid (B*H, Lq-tiles); full-L K/V resident per head.
#   q_ref: (tq, D) block of the (M, C) q buffer (scale already folded in)
#   k_ref/v_ref: (L, D) block, invariant over the q-tile axis (stays in VMEM)
# ---------------------------------------------------------------------------
def _attn_kernel(q_ref, k_ref, v_ref, o_ref):
    # NT matmul (contract D of both operands) -- no in-kernel transpose.
    s = jax.lax.dot_general(q_ref[...], k_ref[...], (((1,), (1,)), ((), ())),
                            preferred_element_type=jnp.float32)    # (tq, L)
    m = jnp.max(s, axis=-1, keepdims=True)
    # TODO(synk): on v6e/v7x the exponentials could be computed in bf16 for
    # ~2x EUP throughput; kept f32 (works on v5e too, accuracy headroom).
    p = jnp.exp(s - m)
    l = jnp.sum(p, axis=-1, keepdims=True)
    o = jnp.dot(p.astype(v_ref.dtype), v_ref[...],
                preferred_element_type=jnp.float32)                 # (tq, D)
    o_ref[...] = (o * pl.reciprocal(l, approx=True)).astype(o_ref.dtype)


# ---------------------------------------------------------------------------
# Kernel 3: attn proj + residual + norm2 + MLP + residual over token tiles.
# ---------------------------------------------------------------------------
def _post_attn_kernel(x_ref, a_ref,
                      wp_ref, bp_ref,
                      n2w_ref, n2b_ref,
                      w1_ref, b1_ref, w2_ref, b2_ref,
                      o_ref):
    cdt = wp_ref.dtype
    x = x_ref[...].astype(jnp.float32)
    x = x + (jnp.dot(a_ref[...], wp_ref[...], preferred_element_type=jnp.float32)
             + bp_ref[...])

    h = _layernorm_f32(x, n2w_ref[...], n2b_ref[...]).astype(cdt)
    # TODO(synk): for production C on v7x, tile this MLP over the hidden dim
    # with an f32 accumulator instead of materializing the (tm, hidden) block.
    h = jnp.dot(h, w1_ref[...], preferred_element_type=jnp.float32) + b1_ref[...]
    # Exact erf GELU to match torch.nn.GELU default (approximate=True would
    # move work from VALU to EUP on v5e if the accuracy contract allows).
    h = jax.nn.gelu(h, approximate=False)
    x = x + (jnp.dot(h.astype(cdt), w2_ref[...],
                     preferred_element_type=jnp.float32) + b2_ref[...])
    o_ref[...] = x.astype(o_ref.dtype)


def _pick_tile(total, want, multiple=8):
    """Largest divisor of `total` that is <= want, preferring multiples of 8.

    Never falls back to the full dimension when `want < total` (that fallback
    could silently put the whole array in one VMEM block).
    """
    want = min(want, total)
    if want == total:
        return total
    best_any = 1
    for t in range(want, 0, -1):
        if total % t == 0:
            if t % multiple == 0:
                return t
            if best_any == 1:
                best_any = t
    return best_any


def block_forward(x, skip, params, num_heads, *,
                  compute_dtype=jnp.float32,
                  block_m=512, block_q=256):
    """U-ViT Block forward (with skip_linear) via Pallas TPU kernels."""
    B, L, C = x.shape
    H = num_heads
    assert C % H == 0
    D = C // H
    M = B * L
    hidden = params['fc1_w'].shape[0]
    scale = D ** -0.5
    cdt = compute_dtype
    f32 = jnp.float32

    # ---- host-side weight prep: pre-transpose, split qkv, fold scale -------
    wsx = params['ws_a'].T.astype(cdt)                  # (C, C)  x-half
    wss = params['ws_b'].T.astype(cdt)                  # (C, C)  skip-half
    wsb = params['ws_bias'].astype(f32)                 # (1, C)
    n1w = params['n1_w'].astype(f32)
    n1b = params['n1_b'].astype(f32)
    wq = (params['qkv_w'][:C].T * scale).astype(cdt)    # (C, C) scale folded
    wk = params['qkv_w'][C:2 * C].T.astype(cdt)
    wv = params['qkv_w'][2 * C:].T.astype(cdt)
    wp = params['proj_w'].T.astype(cdt)                 # (C, C)
    bp = params['proj_b'].astype(f32)
    n2w = params['n2_w'].astype(f32)
    n2b = params['n2_b'].astype(f32)
    w1 = params['fc1_w'].T.astype(cdt)                  # (C, hidden)
    b1 = params['fc1_b'].astype(f32)
    w2 = params['fc2_w'].T.astype(cdt)                  # (hidden, C)
    b2 = params['fc2_b'].astype(f32)

    # Activations DMA'd at compute width (halves HBM traffic when bf16).
    x2 = x.reshape(M, C).astype(cdt)
    s2 = skip.reshape(M, C).astype(cdt)

    tm = _pick_tile(M, block_m)
    tok = pl.BlockSpec((tm, C), lambda i: (i, 0))

    def full(w):
        # Grid-invariant weight block.  NOTE: at production C these should be
        # pipeline_mode=pl.Buffered(1) + an explicit vmem_limit_bytes so they
        # are not double-buffered; left at defaults for these small shapes.
        return pl.BlockSpec(w.shape, lambda i: (0, 0))

    # ---- kernel 1: skip_linear + norm1 + q/k/v projections -----------------
    k1_w = (wsx, wss, wsb, n1w, n1b, wq, wk, wv)
    k1_flops = int(2 * M * C * C * 5)
    k1_bytes = int((6 * M * C + sum(int(w.size) for w in k1_w)) * 4)
    x_skip, q, k, v = pl.pallas_call(
        _pre_attn_kernel,
        out_shape=(jax.ShapeDtypeStruct((M, C), f32),
                   jax.ShapeDtypeStruct((M, C), cdt),
                   jax.ShapeDtypeStruct((M, C), cdt),
                   jax.ShapeDtypeStruct((M, C), cdt)),
        grid=(M // tm,),
        in_specs=[tok, tok] + [full(w) for w in k1_w],
        out_specs=(tok, tok, tok, tok),
        compiler_params=pltpu.CompilerParams(dimension_semantics=("parallel",)),
        cost_estimate=pl.CostEstimate(flops=k1_flops, transcendentals=int(M),
                                      bytes_accessed=k1_bytes),
    )(x2, s2, *k1_w)

    # ---- kernel 2: attention directly on the (M, C) layout ------------------
    # grid = (B*H, L // tq);  g -> (batch b = g // H, head h = g % H)
    #   q/o block (tq, D): rows b*L + qi*tq .. , cols h*D ..
    #   k/v block (L, D):  rows b*L .. (invariant over qi -> stays resident)
    # No XLA head split/merge and no online-softmax scratch needed.
    # TODO(synk): for D < 128, batch several heads per grid step to keep the
    # last block dim lane-dense (here the toy/test uses D = 128).
    G = B * H
    tq = _pick_tile(L, block_q)
    n_q = L // tq
    q_spec = pl.BlockSpec((tq, D), lambda g, qi: (g // H * n_q + qi, g % H))
    kv_spec = pl.BlockSpec((L, D), lambda g, qi: (g // H, g % H))
    attn_flops = int(4 * G * L * L * D)
    attn_bytes = int(4 * M * C * jnp.dtype(cdt).itemsize)
    attn = pl.pallas_call(
        _attn_kernel,
        out_shape=jax.ShapeDtypeStruct((M, C), cdt),
        grid=(G, n_q),
        in_specs=[q_spec, kv_spec, kv_spec],
        out_specs=q_spec,
        compiler_params=pltpu.CompilerParams(
            dimension_semantics=("parallel", "parallel")),
        cost_estimate=pl.CostEstimate(flops=attn_flops,
                                      transcendentals=int(G * L * L),
                                      bytes_accessed=attn_bytes),
    )(q, k, v)

    # ---- kernel 3: proj + residual + norm2 + MLP + residual ------------------
    k3_w = (wp, bp, n2w, n2b, w1, b1, w2, b2)
    k3_flops = int(2 * M * C * C + 4 * M * C * hidden)
    k3_bytes = int((3 * M * C + sum(int(w.size) for w in k3_w)) * 4)
    out = pl.pallas_call(
        _post_attn_kernel,
        out_shape=jax.ShapeDtypeStruct((M, C), x.dtype),
        grid=(M // tm,),
        in_specs=[tok, tok] + [full(w) for w in k3_w],
        out_specs=tok,
        compiler_params=pltpu.CompilerParams(dimension_semantics=("parallel",)),
        cost_estimate=pl.CostEstimate(flops=k3_flops,
                                      transcendentals=int(M * hidden),
                                      bytes_accessed=k3_bytes),
    )(x_skip, attn, *k3_w)

    return out.reshape(B, L, C)


def block_reference(x, skip, params, num_heads):
    """Pure-JAX reference mirroring the PyTorch module (math attention mode)."""
    B, L, C = x.shape
    D = C // num_heads
    scale = D ** -0.5
    W_skip = jnp.concatenate([params['ws_a'], params['ws_b']], axis=1)  # (C, 2C)
    x = jnp.einsum('blc,dc->bld', jnp.concatenate([x, skip], -1), W_skip) + params['ws_bias']

    def ln(h, w, b):
        mu = h.mean(-1, keepdims=True)
        var = ((h - mu) ** 2).mean(-1, keepdims=True)
        return (h - mu) / jnp.sqrt(var + 1e-5) * w[0] + b[0]

    h = ln(x, params['n1_w'], params['n1_b'])
    qkv = jnp.einsum('blc,dc->bld', h, params['qkv_w'])            # (B, L, 3C)
    qkv = qkv.reshape(B, L, 3, num_heads, D).transpose(2, 0, 3, 1, 4)
    q, k, v = qkv[0], qkv[1], qkv[2]                               # (B, H, L, D)
    attn = jax.nn.softmax(jnp.einsum('bhld,bhmd->bhlm', q, k) * scale, axis=-1)
    o = jnp.einsum('bhlm,bhmd->bhld', attn, v).transpose(0, 2, 1, 3).reshape(B, L, C)
    o = jnp.einsum('blc,dc->bld', o, params['proj_w']) + params['proj_b'][0]
    x = x + o

    h = ln(x, params['n2_w'], params['n2_b'])
    h = jnp.einsum('blc,hc->blh', h, params['fc1_w']) + params['fc1_b'][0]
    h = jax.nn.gelu(h, approximate=False)
    h = jnp.einsum('blh,ch->blc', h, params['fc2_w']) + params['fc2_b'][0]
    return x + h


if __name__ == "__main__":
    # Small but layout-representative: head_dim = 128 keeps all attention
    # blocks lane-dense (last block dim a multiple of 128).
    B, L, dim = 2, 16, 256
    num_heads = 2
    hidden = int(dim * 4.0)

    key = jax.random.PRNGKey(0)
    ks = jax.random.split(key, 12)

    params = {
        # skip_linear: Linear(2*dim, dim) — weight split into x-half / skip-half
        'ws_a':    jax.random.normal(ks[0], (dim, dim), jnp.float32) * 0.02,
        'ws_b':    jax.random.normal(ks[1], (dim, dim), jnp.float32) * 0.02,
        'ws_bias': jax.random.normal(ks[2], (1, dim), jnp.float32) * 0.02,
        # norm1
        'n1_w': jnp.ones((1, dim), jnp.float32),
        'n1_b': jnp.zeros((1, dim), jnp.float32),
        # attn.qkv: Linear(dim, 3*dim, bias=False)
        'qkv_w': jax.random.normal(ks[3], (3 * dim, dim), jnp.float32) * 0.02,
        # attn.proj: Linear(dim, dim)
        'proj_w': jax.random.normal(ks[4], (dim, dim), jnp.float32) * 0.02,
        'proj_b': jax.random.normal(ks[5], (1, dim), jnp.float32) * 0.02,
        # norm2
        'n2_w': jnp.ones((1, dim), jnp.float32),
        'n2_b': jnp.zeros((1, dim), jnp.float32),
        # mlp
        'fc1_w': jax.random.normal(ks[6], (hidden, dim), jnp.float32) * 0.02,
        'fc1_b': jax.random.normal(ks[7], (1, hidden), jnp.float32) * 0.02,
        'fc2_w': jax.random.normal(ks[8], (dim, hidden), jnp.float32) * 0.02,
        'fc2_b': jax.random.normal(ks[9], (1, dim), jnp.float32) * 0.02,
    }

    x = jax.random.normal(ks[10], (B, L, dim), jnp.float32)
    skip = jax.random.normal(ks[11], (B, L, dim), jnp.float32)

    ref = block_reference(x, skip, params, num_heads)

    # f32 operands — small tiles exercise multiple token tiles, multiple
    # (batch*head) groups and multiple q tiles of the attention grid.
    # Tolerances account for the TPU default (bf16-pass) MXU precision used by
    # both kernel and reference, plus the approximate softmax reciprocal.
    out_f32 = block_forward(x, skip, params, num_heads,
                            compute_dtype=jnp.float32,
                            block_m=16, block_q=8)
    out_f32 = jax.block_until_ready(out_f32)
    assert out_f32.shape == (B, L, dim)
    err32 = jnp.max(jnp.abs(out_f32 - ref))
    assert jnp.allclose(out_f32, ref, atol=3e-2, rtol=3e-2), f"f32 max err {err32}"

    # bf16 matmul operands with f32 accumulation — looser check.
    out_bf16 = block_forward(x, skip, params, num_heads,
                             compute_dtype=jnp.bfloat16,
                             block_m=16, block_q=16)
    out_bf16 = jax.block_until_ready(out_bf16)
    err16 = jnp.max(jnp.abs(out_bf16 - ref))
    assert jnp.allclose(out_bf16, ref, atol=1e-1, rtol=1e-1), f"bf16 max err {err16}"

    print("KERNEL_OK")
</pallas_src>

<mosaic_0001>
module attributes {stable_mosaic.version = 11 : i64} {
  func.func @_pre_attn_kernel(%arg0: i32, %arg1: memref<16x256xf32, #tpu.memory_space<vmem>>, %arg2: memref<16x256xf32, #tpu.memory_space<vmem>>, %arg3: memref<256x256xf32, #tpu.memory_space<vmem>>, %arg4: memref<256x256xf32, #tpu.memory_space<vmem>>, %arg5: memref<1x256xf32, #tpu.memory_space<vmem>>, %arg6: memref<1x256xf32, #tpu.memory_space<vmem>>, %arg7: memref<1x256xf32, #tpu.memory_space<vmem>>, %arg8: memref<256x256xf32, #tpu.memory_space<vmem>>, %arg9: memref<256x256xf32, #tpu.memory_space<vmem>>, %arg10: memref<256x256xf32, #tpu.memory_space<vmem>>, %arg11: memref<16x256xf32, #tpu.memory_space<vmem>>, %arg12: memref<16x256xf32, #tpu.memory_space<vmem>>, %arg13: memref<16x256xf32, #tpu.memory_space<vmem>>, %arg14: memref<16x256xf32, #tpu.memory_space<vmem>>) attributes {dimension_semantics = [#tpu.dimension_semantics<parallel>], iteration_bounds = array<i64: 2>, scalar_prefetch = 0 : i64, scratch_operands = 0 : i64, tpu.core_type = #tpu.core_type<tc>, window_params = [{transform_indices = @transform_0, window_bounds = array<i64: 16, 256>}, {transform_indices = @transform_1, window_bounds = array<i64: 16, 256>}, {pipeline_mode = #tpu.pipeline_mode<synchronous>, transform_indices = @transform_2, window_bounds = array<i64: 256, 256>}, {pipeline_mode = #tpu.pipeline_mode<synchronous>, transform_indices = @transform_3, window_bounds = array<i64: 256, 256>}, {pipeline_mode = #tpu.pipeline_mode<synchronous>, transform_indices = @transform_4, window_bounds = array<i64: 1, 256>}, {pipeline_mode = #tpu.pipeline_mode<synchronous>, transform_indices = @transform_5, window_bounds = array<i64: 1, 256>}, {pipeline_mode = #tpu.pipeline_mode<synchronous>, transform_indices = @transform_6, window_bounds = array<i64: 1, 256>}, {pipeline_mode = #tpu.pipeline_mode<synchronous>, transform_indices = @transform_7, window_bounds = array<i64: 256, 256>}, {pipeline_mode = #tpu.pipeline_mode<synchronous>, transform_indices = @transform_8, window_bounds = array<i64: 256, 256>}, {pipeline_mode = #tpu.pipeline_mode<synchronous>, transform_indices = @transform_9, window_bounds = array<i64: 256, 256>}, {transform_indices = @transform_10, window_bounds = array<i64: 16, 256>}, {transform_indices = @transform_11, window_bounds = array<i64: 16, 256>}, {transform_indices = @transform_12, window_bounds = array<i64: 16, 256>}, {transform_indices = @transform_13, window_bounds = array<i64: 16, 256>}]} {
    %c0 = arith.constant 0 : index
    %c0_0 = arith.constant 0 : index
    %0 = vector.load %arg1[%c0, %c0_0] : memref<16x256xf32, #tpu.memory_space<vmem>>, vector<16x256xf32>
    %c0_1 = arith.constant 0 : index
    %c0_2 = arith.constant 0 : index
    %1 = vector.load %arg3[%c0_1, %c0_2] : memref<256x256xf32, #tpu.memory_space<vmem>>, vector<256x256xf32>
    %cst = arith.constant dense<0.000000e+00> : vector<16x256xf32>
    %2 = tpu.matmul %0, %1, %cst {dimension_numbers = #tpu.dot_dimension_numbers<[1], [0], [0], [1], [0, 0, 1, 1], [], []>} : vector<16x256xf32>, vector<256x256xf32>, vector<16x256xf32> -> vector<16x256xf32>
    %c0_3 = arith.constant 0 : index
    %c0_4 = arith.constant 0 : index
    %3 = vector.load %arg2[%c0_3, %c0_4] : memref<16x256xf32, #tpu.memory_space<vmem>>, vector<16x256xf32>
    %c0_5 = arith.constant 0 : index
    %c0_6 = arith.constant 0 : index
    %4 = vector.load %arg4[%c0_5, %c0_6] : memref<256x256xf32, #tpu.memory_space<vmem>>, vector<256x256xf32>
    %cst_7 = arith.constant dense<0.000000e+00> : vector<16x256xf32>
    %5 = tpu.matmul %3, %4, %cst_7 {dimension_numbers = #tpu.dot_dimension_numbers<[1], [0], [0], [1], [0, 0, 1, 1], [], []>} : vector<16x256xf32>, vector<256x256xf32>, vector<16x256xf32> -> vector<16x256xf32>
    %6 = arith.addf %2, %5 : vector<16x256xf32>
    %c0_8 = arith.constant 0 : index
    %c0_9 = arith.constant 0 : index
    %7 = vector.load %arg5[%c0_8, %c0_9] : memref<1x256xf32, #tpu.memory_space<vmem>>, vector<1x256xf32>
    %8 = vector.broadcast %7 : vector<1x256xf32> to vector<16x256xf32>
    %9 = arith.addf %6, %8 : vector<16x256xf32>
    %c0_10 = arith.constant 0 : index
    %c0_11 = arith.constant 0 : index
    %10 = vector.load %arg11[%c0_10, %c0_11] : memref<16x256xf32, #tpu.memory_space<vmem>>, vector<16x256xf32>
    tpu.vector_store %arg11[%c0_10, %c0_11], %9 {strides = array<i32>} : memref<16x256xf32, #tpu.memory_space<vmem>>, vector<16x256xf32>,
    %c0_12 = arith.constant 0 : index
    %c0_13 = arith.constant 0 : index
    %11 = vector.load %arg6[%c0_12, %c0_13] : memref<1x256xf32, #tpu.memory_space<vmem>>, vector<1x256xf32>
    %c0_14 = arith.constant 0 : index
    %c0_15 = arith.constant 0 : index
    %12 = vector.load %arg7[%c0_14, %c0_15] : memref<1x256xf32, #tpu.memory_space<vmem>>, vector<1x256xf32>
    %cst_16 = arith.constant dense<0.000000e+00> : vector<16xf32>
    %13 = vector.multi_reduction <add>, %9, %cst_16 [1] : vector<16x256xf32> to vector<16xf32>
    %14 = vector.shape_cast %13 : vector<16xf32> to vector<16x1xf32>
    %cst_17 = arith.constant 2.560000e+02 : f32
    %15 = vector.broadcast %cst_17 : f32 to vector<16x1xf32>
    %16 = arith.divf %14, %15 : vector<16x1xf32>
    %17 = vector.broadcast %16 : vector<16x1xf32> to vector<16x256xf32>
    %18 = arith.subf %9, %17 : vector<16x256xf32>
    %19 = arith.mulf %18, %18 : vector<16x256xf32>
    %cst_18 = arith.constant dense<0.000000e+00> : vector<16xf32>
    %20 = vector.multi_reduction <add>, %19, %cst_18 [1] : vector<16x256xf32> to vector<16xf32>
    %21 = vector.shape_cast %20 : vector<16xf32> to vector<16x1xf32>
    %cst_19 = arith.constant 2.560000e+02 : f32
    %22 = vector.broadcast %cst_19 : f32 to vector<16x1xf32>
    %23 = arith.divf %21, %22 : vector<16x1xf32>
    %24 = vector.broadcast %16 : vector<16x1xf32> to vector<16x256xf32>
    %25 = arith.subf %9, %24 : vector<16x256xf32>
    %cst_20 = arith.constant 9.99999974E-6 : f32
    %26 = vector.broadcast %cst_20 : f32 to vector<16x1xf32>
    %27 = arith.addf %23, %26 : vector<16x1xf32>
    %28 = math.rsqrt %27 : vector<16x1xf32>
    %29 = vector.broadcast %28 : vector<16x1xf32> to vector<16x256xf32>
    %30 = arith.mulf %25, %29 : vector<16x256xf32>
    %31 = vector.broadcast %11 : vector<1x256xf32> to vector<16x256xf32>
    %32 = arith.mulf %30, %31 : vector<16x256xf32>
    %33 = vector.broadcast %12 : vector<1x256xf32> to vector<16x256xf32>
    %34 = arith.addf %32, %33 : vector<16x256xf32>
    %c0_21 = arith.constant 0 : index
    %c0_22 = arith.constant 0 : index
    %35 = vector.load %arg8[%c0_21, %c0_22] : memref<256x256xf32, #tpu.memory_space<vmem>>, vector<256x256xf32>
    %cst_23 = arith.constant dense<0.000000e+00> : vector<16x256xf32>
    %36 = tpu.matmul %34, %35, %cst_23 {dimension_numbers = #tpu.dot_dimension_numbers<[1], [0], [0], [1], [0, 0, 1, 1], [], []>} : vector<16x256xf32>, vector<256x256xf32>, vector<16x256xf32> -> vector<16x256xf32>
    %c0_24 = arith.constant 0 : index
    %c0_25 = arith.constant 0 : index
    %37 = vector.load %arg12[%c0_24, %c0_25] : memref<16x256xf32, #tpu.memory_space<vmem>>, vector<16x256xf32>
    tpu.vector_store %arg12[%c0_24, %c0_25], %36 {strides = array<i32>} : memref<16x256xf32, #tpu.memory_space<vmem>>, vector<16x256xf32>,
    %c0_26 = arith.constant 0 : index
    %c0_27 = arith.constant 0 : index
    %38 = vector.load %arg9[%c0_26, %c0_27] : memref<256x256xf32, #tpu.memory_space<vmem>>, vector<256x256xf32>
    %cst_28 = arith.constant dense<0.000000e+00> : vector<16x256xf32>
    %39 = tpu.matmul %34, %38, %cst_28 {dimension_numbers = #tpu.dot_dimension_numbers<[1], [0], [0], [1], [0, 0, 1, 1], [], []>} : vector<16x256xf32>, vector<256x256xf32>, vector<16x256xf32> -> vector<16x256xf32>
    %c0_29 = arith.constant 0 : index
    %c0_30 = arith.constant 0 : index
    %40 = vector.load %arg13[%c0_29, %c0_30] : memref<16x256xf32, #tpu.memory_space<vmem>>, vector<16x256xf32>
    tpu.vector_store %arg13[%c0_29, %c0_30], %39 {strides = array<i32>} : memref<16x256xf32, #tpu.memory_space<vmem>>, vector<16x256xf32>,
    %c0_31 = arith.constant 0 : index
    %c0_32 = arith.constant 0 : index
    %41 = vector.load %arg10[%c0_31, %c0_32] : memref<256x256xf32, #tpu.memory_space<vmem>>, vector<256x256xf32>
    %cst_33 = arith.constant dense<0.000000e+00> : vector<16x256xf32>
    %42 = tpu.matmul %34, %41, %cst_33 {dimension_numbers = #tpu.dot_dimension_numbers<[1], [0], [0], [1], [0, 0, 1, 1], [], []>} : vector<16x256xf32>, vector<256x256xf32>, vector<16x256xf32> -> vector<16x256xf32>
    %c0_34 = arith.constant 0 : index
    %c0_35 = arith.constant 0 : index
    %43 = vector.load %arg14[%c0_34, %c0_35] : memref<16x256xf32, #tpu.memory_space<vmem>>, vector<16x256xf32>
    tpu.vector_store %arg14[%c0_34, %c0_35], %42 {strides = array<i32>} : memref<16x256xf32, #tpu.memory_space<vmem>>, vector<16x256xf32>,
    return
  }
  func.func @transform_0(%arg0: i32) -> (i32, i32) {
    %c0_i32 = arith.constant 0 : i32
    %c0_i32_0 = arith.constant 0 : i32
    return %arg0, %c0_i32 : i32, i32
  }
  func.func @transform_1(%arg0: i32) -> (i32, i32) {
    %c0_i32 = arith.constant 0 : i32
    %c0_i32_0 = arith.constant 0 : i32
    return %arg0, %c0_i32 : i32, i32
  }
  func.func @transform_2(%arg0: i32) -> (i32, i32) {
    %c0_i32 = arith.constant 0 : i32
    %c0_i32_0 = arith.constant 0 : i32
    %c0_i32_1 = arith.constant 0 : i32
    return %c0_i32, %c0_i32_0 : i32, i32
  }
  func.func @transform_3(%arg0: i32) -> (i32, i32) {
    %c0_i32 = arith.constant 0 : i32
    %c0_i32_0 = arith.constant 0 : i32
    %c0_i32_1 = arith.constant 0 : i32
    return %c0_i32, %c0_i32_0 : i32, i32
  }
  func.func @transform_4(%arg0: i32) -> (i32, i32) {
    %c0_i32 = arith.constant 0 : i32
    %c0_i32_0 = arith.constant 0 : i32
    %c0_i32_1 = arith.constant 0 : i32
    return %c0_i32, %c0_i32_0 : i32, i32
  }
  func.func @transform_5(%arg0: i32) -> (i32, i32) {
    %c0_i32 = arith.constant 0 : i32
    %c0_i32_0 = arith.constant 0 : i32
    %c0_i32_1 = arith.constant 0 : i32
    return %c0_i32, %c0_i32_0 : i32, i32
  }
  func.func @transform_6(%arg0: i32) -> (i32, i32) {
    %c0_i32 = arith.constant 0 : i32
    %c0_i32_0 = arith.constant 0 : i32
    %c0_i32_1 = arith.constant 0 : i32
    return %c0_i32, %c0_i32_0 : i32, i32
  }
  func.func @transform_7(%arg0: i32) -> (i32, i32) {
    %c0_i32 = arith.constant 0 : i32
    %c0_i32_0 = arith.constant 0 : i32
    %c0_i32_1 = arith.constant 0 : i32
    return %c0_i32, %c0_i32_0 : i32, i32
  }
  func.func @transform_8(%arg0: i32) -> (i32, i32) {
    %c0_i32 = arith.constant 0 : i32
    %c0_i32_0 = arith.constant 0 : i32
    %c0_i32_1 = arith.constant 0 : i32
    return %c0_i32, %c0_i32_0 : i32, i32
  }
  func.func @transform_9(%arg0: i32) -> (i32, i32) {
    %c0_i32 = arith.constant 0 : i32
    %c0_i32_0 = arith.constant 0 : i32
    %c0_i32_1 = arith.constant 0 : i32
    return %c0_i32, %c0_i32_0 : i32, i32
  }
  func.func @transform_10(%arg0: i32) -> (i32, i32) {
    %c0_i32 = arith.constant 0 : i32
    %c0_i32_0 = arith.constant 0 : i32
    return %arg0, %c0_i32 : i32, i32
  }
  func.func @transform_11(%arg0: i32) -> (i32, i32) {
    %c0_i32 = arith.constant 0 : i32
    %c0_i32_0 = arith.constant 0 : i32
    return %arg0, %c0_i32 : i32, i32
  }
  func.func @transform_12(%arg0: i32) -> (i32, i32) {
    %c0_i32 = arith.constant 0 : i32
    %c0_i32_0 = arith.constant 0 : i32
    return %arg0, %c0_i32 : i32, i32
  }
  func.func @transform_13(%arg0: i32) -> (i32, i32) {
    %c0_i32 = arith.constant 0 : i32
    %c0_i32_0 = arith.constant 0 : i32
    return %arg0, %c0_i32 : i32, i32
  }
}

</mosaic_0001>

<llo_original>
// kernel: tpu_custom_call.1
$region0: #{tpu_custom_call.1}
  #allocation0 [shape = 'u32[]', space=smem, size = 0x4, offset = 0x4, fixed_abs, tag = 'smem constant byte address 0x4 - core index']
  #allocation1 [shape = 'u32[72,128]{1,0:T(1,128)}', space=vmem, size = 0x9000, scoped, tag = 'internal scratch']
  %s0 = inlined_call_operand.hbm [shape: f32[32,256], index: 0, kind: input, shape index: {}]
  %s1 = inlined_call_operand.hbm [shape: f32[32,256], index: 1, kind: input, shape index: {}]
  %s2 = inlined_call_operand.hbm [shape: f32[256,256], index: 2, kind: input, shape index: {}]
  %s3 = inlined_call_operand.hbm [shape: f32[256,256], index: 3, kind: input, shape index: {}]
  %s4 = inlined_call_operand.vmem [shape: f32[1,256], index: 4, kind: input, shape index: {}]
  %s5 = inlined_call_operand.vmem [shape: f32[1,256], index: 5, kind: input, shape index: {}]
  %s6 = inlined_call_operand.hbm [shape: f32[1,256], index: 6, kind: input, shape index: {}]
  %s7 = inlined_call_operand.hbm [shape: f32[256,256], index: 7, kind: input, shape index: {}]
  %s8 = inlined_call_operand.hbm [shape: f32[256,256], index: 8, kind: input, shape index: {}]
  %s9 = inlined_call_operand.hbm [shape: f32[256,256], index: 9, kind: input, shape index: {}]
  %s10 = inlined_call_operand.hbm [shape: f32[32,256], index: 10, kind: output, shape index: {0}]
  %s11 = inlined_call_operand.hbm [shape: f32[32,256], index: 11, kind: output, shape index: {1}]
  %s12 = inlined_call_operand.hbm [shape: f32[32,256], index: 12, kind: output, shape index: {2}]
  %s13 = inlined_call_operand.hbm [shape: f32[32,256], index: 13, kind: output, shape index: {3}]
  %14 = xla_tuple %s10, %s11, %s12, %s13
  %s15 = sld [smem:[#allocation0]]
  $region129: #{tpu_custom_call.1} parent=0
    _
  %s17 = ssub.s32 1, %s15
  %s18 = scalar_select 0, %s17, %s15
  $region1: #{tpu_custom_call.1} parent=0
    #allocation2 [shape = 'u8[32768]{0}', space=vmem, size = 0x8000, scoped, tag = 'input window, operand 0']
    #allocation3 [shape = 's32[2]{0}', space=sflag, size = 0x8, scoped, tag = 'scoped memory for tpu_custom_call.1']
    #allocation4 [shape = 's32[2]{0}', space=sflag, size = 0x8, scoped, tag = 'scoped memory for tpu_custom_call.1']
    #allocation5 [shape = 'u8[32768]{0}', space=vmem, size = 0x8000, scoped, tag = 'input window, operand 1']
    #allocation6 [shape = 's32[2]{0}', space=sflag, size = 0x8, scoped, tag = 'scoped memory for tpu_custom_call.1']
    #allocation7 [shape = 'u8[262144]{0}', space=vmem, size = 0x40000, scoped, tag = 'input window, operand 2, single buffered']
    #allocation8 [shape = 'u8[262144]{0}', space=vmem, size = 0x40000, scoped, tag = 'input window, operand 3, single buffered']
    #allocation9 [shape = 's32[1]{0}', space=sflag, size = 0x4, scoped, tag = 'scoped memory for tpu_custom_call.1']
    #allocation10 [shape = 'u8[1024]{0}', space=vmem, size = 0x400, scoped, tag = 'input window, operand 6, single buffered']
    #allocation11 [shape = 'u8[262144]{0}', space=vmem, size = 0x40000, scoped, tag = 'input window, operand 7, single buffered']
    #allocation12 [shape = 's32[1]{0}', space=sflag, size = 0x4, scoped, tag = 'scoped memory for tpu_custom_call.1']
    #allocation13 [shape = 'u8[262144]{0}', space=vmem, size = 0x40000, scoped, tag = 'input window, operand 8, single buffered']
    #allocation14 [shape = 'u8[262144]{0}', space=vmem, size = 0x40000, scoped, tag = 'input window, operand 9, single buffered']
    #allocation15 [shape = 's32[1]{0}', space=sflag, size = 0x4, scoped, tag = 'scoped memory for tpu_custom_call.1']
    #allocation16 [shape = 'u8[32768]{0}', space=vmem, size = 0x8000, scoped, tag = 'output window, operand 0']
    #allocation17 [shape = 'u8[32768]{0}', space=vmem, size = 0x8000, scoped, tag = 'output window, operand 1']
    #allocation18 [shape = 's32[2]{0}', space=sflag, size = 0x8, scoped, tag = 'scoped memory for tpu_custom_call.1']
    #allocation19 [shape = 'u8[32768]{0}', space=vmem, size = 0x8000, scoped, tag = 'output window, operand 2']
    #allocation20 [shape = 'u8[32768]{0}', space=vmem, size = 0x8000, scoped, tag = 'output window, operand 3']
    #allocation21 [shape = 's32[2]{0}', space=sflag, size = 0x8, scoped, tag = 'scoped memory for tpu_custom_call.1']
    %19 = vsyncpa [#allocation3], 0
    %s20 = scalar_lea.sflag [#allocation3], 1
    %21 = vsyncpa %s20, 0
    %22 = vsyncpa [#allocation6], 0
    %s23 = scalar_lea.sflag [#allocation6], 1
    %24 = vsyncpa %s23, 0
    %25 = vsyncpa [#allocation9], 0
    %26 = vsyncpa [#allocation12], 0
    %27 = vsyncpa [#allocation15], 0
    %28 = vsyncpa [#allocation4], 0
    %s29 = scalar_lea.sflag [#allocation4], 1
    %30 = vsyncpa %s29, 0
    %31 = vsyncpa [#allocation18], 0
    %s32 = scalar_lea.sflag [#allocation18], 1
    %33 = vsyncpa %s32, 0
    %34 = vsyncpa [#allocation21], 0
    %s35 = scalar_lea.sflag [#allocation21], 1
    %36 = vsyncpa %s35, 0
    loop: start=0, step=1, limit=4
    $region2: #{tpu_custom_call.1} parent=1 // loop_pre_header
      _
    $region3: #{tpu_custom_call.1} parent=1 // loop_header
      %s38 = sphi 0, %s42
      %p39 = scmp.ge.s32.totalorder %s38, 4
      %s48 = sphi 0, %s50
      %s51 = sphi 0, %s48
      %s52 = sphi 0, %s51
      %s68 = sphi 0, %s52
      %s74 = sphi 0, %s76
      %s77 = sphi 0, %s74
      %s78 = sphi 0, %s77
      %s94 = sphi 0, %s78
      %s98 = sphi 0, %s98
      %s100 = sphi 0, %s98
      %s101 = sphi 0, %s100
      %s115 = sphi 0, %s101
      %s119 = sphi 0, %s119
      %s121 = sphi 0, %s119
      %s122 = sphi 0, %s121
      %s136 = sphi 0, %s122
      %s140 = sphi 0, %s140
      %s142 = sphi 0, %s140
      %s143 = sphi 0, %s142
      %s157 = sphi 0, %s143
      %s161 = sphi 0, %s161
      %s163 = sphi 0, %s161
      %s164 = sphi 0, %s163
      %s178 = sphi 0, %s164
      %s182 = sphi 0, %s182
      %s184 = sphi 0, %s182
      %s185 = sphi 0, %s184
      %s199 = sphi 0, %s185
      %s203 = sphi 0, %s203
      %s205 = sphi 0, %s203
      %s206 = sphi 0, %s205
      %s220 = sphi 0, %s206
      %s224 = sphi 0, %s224
      %s226 = sphi 0, %s224
      %s227 = sphi 0, %s226
      %s241 = sphi 0, %s227
      %s245 = sphi 0, %s245
      %s247 = sphi 0, %s245
      %s248 = sphi 0, %s247
      %s262 = sphi 0, %s248
      %s268 = sphi 0, %s270
      %s271 = sphi 0, %s268
      %s272 = sphi 0, %s271
      %s288 = sphi 0, %s272
      %s294 = sphi 0, %s296
      %s297 = sphi 0, %s294
      %s298 = sphi 0, %s297
      %s314 = sphi 0, %s298
      %s320 = sphi 0, %s322
      %s323 = sphi 0, %s320
      %s324 = sphi 0, %s323
      %s340 = sphi 0, %s324
      %s346 = sphi 0, %s348
      %s349 = sphi 0, %s346
      %s350 = sphi 0, %s349
      %s366 = sphi 0, %s350
    $region4: #{tpu_custom_call.1} parent=1 // loop_header_branch
      %41 = sbr.rel (%p39) target = $region8
    $region5: #{tpu_custom_call.1} parent=1 // loop_body
      %s43 = ssub.s32 %s38, 1
      %s44 = ssub.s32 %s38, 2
      %s45 = sadd.s32 %s38, 1
      %s46 = ssub.s32 %s38, %s45
      %p47 = scmp.eq.s32.totalorder %s46, 0
      %s49 = sadd.s32 %s48, 1
      %s50 = scalar_select %p47, %s48, %s49
      %p53 = pneg %p47
      %p54 = scmp.eq.s32.totalorder %s38, 1
      %p55 = por %p53, %p54
      %p56 = scmp.ne.s32.totalorder %s48, %s51
      %p57 = scmp.eq.s32.totalorder %s38, 0
      %p58 = por %p56, %p57
      %p59 = scmp.ne.s32.totalorder %s48, %s51
      %p60 = scmp.eq.s32.totalorder %s43, 1
      %p61 = por %p59, %p60
      %p62 = scmp.ne.s32.totalorder %s51, %s52
      %p63 = scmp.eq.s32.totalorder %s43, 0
      %p64 = por %p62, %p63
      %p65 = scmp.ne.s32.totalorder %s51, %s52
      %p66 = scmp.eq.s32.totalorder %s44, 1
      %p67 = por %p65, %p66
      %p69 = scmp.ne.s32.totalorder %s52, %s68
      %p70 = scmp.eq.s32.totalorder %s44, 0
      %p71 = por %p69, %p70
      %s72 = ssub.s32 %s38, %s45
      %p73 = scmp.eq.s32.totalorder %s72, 0
      %s75 = sadd.s32 %s74, 1
      %s76 = scalar_select %p73, %s74, %s75
      %p79 = pneg %p73
      %p80 = scmp.eq.s32.totalorder %s38, 1
      %p81 = por %p79, %p80
      %p82 = scmp.ne.s32.totalorder %s74, %s77
      %p83 = scmp.eq.s32.totalorder %s38, 0
      %p84 = por %p82, %p83
      %p85 = scmp.ne.s32.totalorder %s74, %s77
      %p86 = scmp.eq.s32.totalorder %s43, 1
      %p87 = por %p85, %p86
      %p88 = scmp.ne.s32.totalorder %s77, %s78
      %p89 = scmp.eq.s32.totalorder %s43, 0
      %p90 = por %p88, %p89
      %p91 = scmp.ne.s32.totalorder %s77, %s78
      %p92 = scmp.eq.s32.totalorder %s44, 1
      %p93 = por %p91, %p92
      %p95 = scmp.ne.s32.totalorder %s78, %s94
      %p96 = scmp.eq.s32.totalorder %s44, 0
      %p97 = por %p95, %p96
      %s99 = sadd.s32 %s98, 1
      %p102 = scmp.eq.s32.totalorder %s38, 1
      %p103 = scmp.ne.s32.totalorder %s98, %s100
      %p104 = scmp.eq.s32.totalorder %s38, 0
      %p105 = por %p103, %p104
      %p106 = scmp.ne.s32.totalorder %s98, %s100
      %p107 = scmp.eq.s32.totalorder %s43, 1
      %p108 = por %p106, %p107
      %p109 = scmp.ne.s32.totalorder %s100, %s101
      %p110 = scmp.eq.s32.totalorder %s43, 0
      %p111 = por %p109, %p110
      %p112 = scmp.ne.s32.totalorder %s100, %s101
      %p113 = scmp.eq.s32.totalorder %s44, 1
      %p114 = por %p112, %p113
      %p116 = scmp.ne.s32.totalorder %s101, %s115
      %p117 = scmp.eq.s32.totalorder %s44, 0
      %p118 = por %p116, %p117
      %s120 = sadd.s32 %s119, 1
      %p123 = scmp.eq.s32.totalorder %s38, 1
      %p124 = scmp.ne.s32.totalorder %s119, %s121
      %p125 = scmp.eq.s32.totalorder %s38, 0
      %p126 = por %p124, %p125
      %p127 = scmp.ne.s32.totalorder %s119, %s121
      %p128 = scmp.eq.s32.totalorder %s43, 1
      %p129 = por %p127, %p128
      %p130 = scmp.ne.s32.totalorder %s121, %s122
      %p131 = scmp.eq.s32.totalorder %s43, 0
      %p132 = por %p130, %p131
      %p133 = scmp.ne.s32.totalorder %s121, %s122
      %p134 = scmp.eq.s32.totalorder %s44, 1
      %p135 = por %p133, %p134
      %p137 = scmp.ne.s32.totalorder %s122, %s136
      %p138 = scmp.eq.s32.totalorder %s44, 0
      %p139 = por %p137, %p138
      %s141 = sadd.s32 %s140, 1
      %p144 = scmp.eq.s32.totalorder %s38, 1
      %p145 = scmp.ne.s32.totalorder %s140, %s142
      %p146 = scmp.eq.s32.totalorder %s38, 0
      %p147 = por %p145, %p146
      %p148 = scmp.ne.s32.totalorder %s140, %s142
      %p149 = scmp.eq.s32.totalorder %s43, 1
      %p150 = por %p148, %p149
      %p151 = scmp.ne.s32.totalorder %s142, %s143
      %p152 = scmp.eq.s32.totalorder %s43, 0
      %p153 = por %p151, %p152
      %p154 = scmp.ne.s32.totalorder %s142, %s143
      %p155 = scmp.eq.s32.totalorder %s44, 1
      %p156 = por %p154, %p155
      %p158 = scmp.ne.s32.totalorder %s143, %s157
      %p159 = scmp.eq.s32.totalorder %s44, 0
      %p160 = por %p158, %p159
      %s162 = sadd.s32 %s161, 1
      %p165 = scmp.eq.s32.totalorder %s38, 1
      %p166 = scmp.ne.s32.totalorder %s161, %s163
      %p167 = scmp.eq.s32.totalorder %s38, 0
      %p168 = por %p166, %p167
      %p169 = scmp.ne.s32.totalorder %s161, %s163
      %p170 = scmp.eq.s32.totalorder %s43, 1
      %p171 = por %p169, %p170
      %p172 = scmp.ne.s32.totalorder %s163, %s164
      %p173 = scmp.eq.s32.totalorder %s43, 0
      %p174 = por %p172, %p173
      %p175 = scmp.ne.s32.totalorder %s163, %s164
      %p176 = scmp.eq.s32.totalorder %s44, 1
      %p177 = por %p175, %p176
      %p179 = scmp.ne.s32.totalorder %s164, %s178
      %p180 = scmp.eq.s32.totalorder %s44, 0
      %p181 = por %p179, %p180
      %s183 = sadd.s32 %s182, 1
      %p186 = scmp.eq.s32.totalorder %s38, 1
      %p187 = scmp.ne.s32.totalorder %s182, %s184
      %p188 = scmp.eq.s32.totalorder %s38, 0
      %p189 = por %p187, %p188
      %p190 = scmp.ne.s32.totalorder %s182, %s184
      %p191 = scmp.eq.s32.totalorder %s43, 1
      %p192 = por %p190, %p191
      %p193 = scmp.ne.s32.totalorder %s184, %s185
      %p194 = scmp.eq.s32.totalorder %s43, 0
      %p195 = por %p193, %p194
      %p196 = scmp.ne.s32.totalorder %s184, %s185
      %p197 = scmp.eq.s32.totalorder %s44, 1
      %p198 = por %p196, %p197
      %p200 = scmp.ne.s32.totalorder %s185, %s199
      %p201 = scmp.eq.s32.totalorder %s44, 0
      %p202 = por %p200, %p201
      %s204 = sadd.s32 %s203, 1
      %p207 = scmp.eq.s32.totalorder %s38, 1
      %p208 = scmp.ne.s32.totalorder %s203, %s205
      %p209 = scmp.eq.s32.totalorder %s38, 0
      %p210 = por %p208, %p209
      %p211 = scmp.ne.s32.totalorder %s203, %s205
      %p212 = scmp.eq.s32.totalorder %s43, 1
      %p213 = por %p211, %p212
      %p214 = scmp.ne.s32.totalorder %s205, %s206
      %p215 = scmp.eq.s32.totalorder %s43, 0
      %p216 = por %p214, %p215
      %p217 = scmp.ne.s32.totalorder %s205, %s206
      %p218 = scmp.eq.s32.totalorder %s44, 1
      %p219 = por %p217, %p218
      %p221 = scmp.ne.s32.totalorder %s206, %s220
      %p222 = scmp.eq.s32.totalorder %s44, 0
      %p223 = por %p221, %p222
      %s225 = sadd.s32 %s224, 1
      %p228 = scmp.eq.s32.totalorder %s38, 1
      %p229 = scmp.ne.s32.totalorder %s224, %s226
      %p230 = scmp.eq.s32.totalorder %s38, 0
      %p231 = por %p229, %p230
      %p232 = scmp.ne.s32.totalorder %s224, %s226
      %p233 = scmp.eq.s32.totalorder %s43, 1
      %p234 = por %p232, %p233
      %p235 = scmp.ne.s32.totalorder %s226, %s227
      %p236 = scmp.eq.s32.totalorder %s43, 0
      %p237 = por %p235, %p236
      %p238 = scmp.ne.s32.totalorder %s226, %s227
      %p239 = scmp.eq.s32.totalorder %s44, 1
      %p240 = por %p238, %p239
      %p242 = scmp.ne.s32.totalorder %s227, %s241
      %p243 = scmp.eq.s32.totalorder %s44, 0
      %p244 = por %p242, %p243
      %s246 = sadd.s32 %s245, 1
      %p249 = scmp.eq.s32.totalorder %s38, 1
      %p250 = scmp.ne.s32.totalorder %s245, %s247
      %p251 = scmp.eq.s32.totalorder %s38, 0
      %p252 = por %p250, %p251
      %p253 = scmp.ne.s32.totalorder %s245, %s247
      %p254 = scmp.eq.s32.totalorder %s43, 1
      %p255 = por %p253, %p254
      %p256 = scmp.ne.s32.totalorder %s247, %s248
      %p257 = scmp.eq.s32.totalorder %s43, 0
      %p258 = por %p256, %p257
      %p259 = scmp.ne.s32.totalorder %s247, %s248
      %p260 = scmp.eq.s32.totalorder %s44, 1
      %p261 = por %p259, %p260
      %p263 = scmp.ne.s32.totalorder %s248, %s262
      %p264 = scmp.eq.s32.totalorder %s44, 0
      %p265 = por %p263, %p264
      %s266 = ssub.s32 %s38, %s45
      %p267 = scmp.eq.s32.totalorder %s266, 0
      %s269 = sadd.s32 %s268, 1
      %s270 = scalar_select %p267, %s268, %s269
      %p273 = pneg %p267
      %p274 = scmp.eq.s32.totalorder %s38, 1
      %p275 = por %p273, %p274
      %p276 = scmp.ne.s32.totalorder %s268, %s271
      %p277 = scmp.eq.s32.totalorder %s38, 0
      %p278 = por %p276, %p277
      %p279 = scmp.ne.s32.totalorder %s268, %s271
      %p280 = scmp.eq.s32.totalorder %s43, 1
      %p281 = por %p279, %p280
      %p282 = scmp.ne.s32.totalorder %s271, %s272
      %p283 = scmp.eq.s32.totalorder %s43, 0
      %p284 = por %p282, %p283
      %p285 = scmp.ne.s32.totalorder %s271, %s272
      %p286 = scmp.eq.s32.totalorder %s44, 1
      %p287 = por %p285, %p286
      %p289 = scmp.ne.s32.totalorder %s272, %s288
      %p290 = scmp.eq.s32.totalorder %s44, 0
      %p291 = por %p289, %p290
      %s292 = ssub.s32 %s38, %s45
      %p293 = scmp.eq.s32.totalorder %s292, 0
      %s295 = sadd.s32 %s294, 1
      %s296 = scalar_select %p293, %s294, %s295
      %p299 = pneg %p293
      %p300 = scmp.eq.s32.totalorder %s38, 1
      %p301 = por %p299, %p300
      %p302 = scmp.ne.s32.totalorder %s294, %s297
      %p303 = scmp.eq.s32.totalorder %s38, 0
      %p304 = por %p302, %p303
      %p305 = scmp.ne.s32.totalorder %s294, %s297
      %p306 = scmp.eq.s32.totalorder %s43, 1
      %p307 = por %p305, %p306
      %p308 = scmp.ne.s32.totalorder %s297, %s298
      %p309 = scmp.eq.s32.totalorder %s43, 0
      %p310 = por %p308, %p309
      %p311 = scmp.ne.s32.totalorder %s297, %s298
      %p312 = scmp.eq.s32.totalorder %s44, 1
      %p313 = por %p311, %p312
      %p315 = scmp.ne.s32.totalorder %s298, %s314
      %p316 = scmp.eq.s32.totalorder %s44, 0
      %p317 = por %p315, %p316
      %s318 = ssub.s32 %s38, %s45
      %p319 = scmp.eq.s32.totalorder %s318, 0
      %s321 = sadd.s32 %s320, 1
      %s322 = scalar_select %p319, %s320, %s321
      %p325 = pneg %p319
      %p326 = scmp.eq.s32.totalorder %s38, 1
      %p327 = por %p325, %p326
      %p328 = scmp.ne.s32.totalorder %s320, %s323
      %p329 = scmp.eq.s32.totalorder %s38, 0
      %p330 = por %p328, %p329
      %p331 = scmp.ne.s32.totalorder %s320, %s323
      %p332 = scmp.eq.s32.totalorder %s43, 1
      %p333 = por %p331, %p332
      %p334 = scmp.ne.s32.totalorder %s323, %s324
      %p335 = scmp.eq.s32.totalorder %s43, 0
      %p336 = por %p334, %p335
      %p337 = scmp.ne.s32.totalorder %s323, %s324
      %p338 = scmp.eq.s32.totalorder %s44, 1
      %p339 = por %p337, %p338
      %p341 = scmp.ne.s32.totalorder %s324, %s340
      %p342 = scmp.eq.s32.totalorder %s44, 0
      %p343 = por %p341, %p342
      %s344 = ssub.s32 %s38, %s45
      %p345 = scmp.eq.s32.totalorder %s344, 0
      %s347 = sadd.s32 %s346, 1
      %s348 = scalar_select %p345, %s346, %s347
      %p351 = pneg %p345
      %p352 = scmp.eq.s32.totalorder %s38, 1
      %p353 = por %p351, %p352
      %p354 = scmp.ne.s32.totalorder %s346, %s349
      %p355 = scmp.eq.s32.totalorder %s38, 0
      %p356 = por %p354, %p355
      %p357 = scmp.ne.s32.totalorder %s346, %s349
      %p358 = scmp.eq.s32.totalorder %s43, 1
      %p359 = por %p357, %p358
      %p360 = scmp.ne.s32.totalorder %s349, %s350
      %p361 = scmp.eq.s32.totalorder %s43, 0
      %p362 = por %p360, %p361
      %p363 = scmp.ne.s32.totalorder %s349, %s350
      %p364 = scmp.eq.s32.totalorder %s44, 1
      %p365 = por %p363, %p364
      %p367 = scmp.ne.s32.totalorder %s350, %s366
      %p368 = scmp.eq.s32.totalorder %s44, 0
      %p369 = por %p367, %p368
      %p370 = scmp.le.s32.totalorder 1, %s38
      %p371 = scmp.lt.s32.totalorder %s38, 3
      %p372 = pnand %p370, %p371
      %p373 = pneg %p372
      // Predicated region
      $region9: #{tpu_custom_call.1} parent=5 // pred_check
        _
      $region10: #{tpu_custom_call.1} parent=5 // pred_check_branch
        %375 = sbr.rel (%p372) target = $region12
      $region11: #{tpu_custom_call.1} parent=5 // pred_region
        %s376 = ssub.s32 %s38, 1
        // Predicated region
        $region13: #{tpu_custom_call.1} parent=11 // pred_check
          %p377 = pneg %p111
        $region14: #{tpu_custom_call.1} parent=11 // pred_check_branch
          %379 = sbr.rel (%p377) target = $region16
        $region15: #{tpu_custom_call.1} parent=11 // pred_region
          %381 = vsyncadd [#allocation6], 0
          %s382 = sshll.u32 %s2, 4
          %s383 = int_to_ptr.hbm [resolvable:$true] %s382
          %s384 = sshll.u32 [#allocation7], 4
          %s385 = int_to_ptr.vmem [resolvable:$true] %s384
          %390 = dma.hbm_to_vmem [thread:$0]  %s383, 8192, %s385, [#allocation6], 256, 256, 16
        $region16: #{tpu_custom_call.1} parent=11 // pred_fallthru
          _
        // Predicated region
        $region17: #{tpu_custom_call.1} parent=11 // pred_check
          %p391 = pneg %p132
        $region18: #{tpu_custom_call.1} parent=11 // pred_check_branch
          %393 = sbr.rel (%p391) target = $region20
        $region19: #{tpu_custom_call.1} parent=11 // pred_region
          %395 = vsyncadd [#allocation9], 0
          %s396 = sshll.u32 %s3, 4
          %s397 = int_to_ptr.hbm [resolvable:$true] %s396
          %s398 = sshll.u32 [#allocation8], 4
          %s399 = int_to_ptr.vmem [resolvable:$true] %s398
          %404 = dma.hbm_to_vmem [thread:$0]  %s397, 8192, %s399, [#allocation9], 256, 256, 16
        $region20: #{tpu_custom_call.1} parent=11 // pred_fallthru
          _
        // Predicated region
        $region21: #{tpu_custom_call.1} parent=11 // pred_check
          %p405 = pneg %p153
        $region22: #{tpu_custom_call.1} parent=11 // pred_check_branch
          %407 = sbr.rel (%p405) target = $region24
        $region23: #{tpu_custom_call.1} parent=11 // pred_region
          _
        $region24: #{tpu_custom_call.1} parent=11 // pred_fallthru
          _
        // Predicated region
        $region25: #{tpu_custom_call.1} parent=11 // pred_check
          %p408 = pneg %p174
        $region26: #{tpu_custom_call.1} parent=11 // pred_check_branch
          %410 = sbr.rel (%p408) target = $region28
        $region27: #{tpu_custom_call.1} parent=11 // pred_region
          _
        $region28: #{tpu_custom_call.1} parent=11 // pred_fallthru
          _
        // Predicated region
        $region29: #{tpu_custom_call.1} parent=11 // pred_check
          %p411 = pneg %p195
        $region30: #{tpu_custom_call.1} parent=11 // pred_check_branch
          %413 = sbr.rel (%p411) target = $region32
        $region31: #{tpu_custom_call.1} parent=11 // pred_region
          %415 = vsyncadd [#allocation9], 0
          %s417 = sshll.u32 %s6, 4
          %s418 = int_to_ptr.hbm [resolvable:$true] %s417
          %s419 = sshll.u32 [#allocation10], 4
          %s420 = int_to_ptr.vmem [resolvable:$true] %s419
          %422 = dma.hbm_to_vmem [thread:$0]  %s418, 32, %s420, [#allocation9]
        $region32: #{tpu_custom_call.1} parent=11 // pred_fallthru
          _
        // Predicated region
        $region33: #{tpu_custom_call.1} parent=11 // pred_check
          %p423 = pneg %p216
        $region34: #{tpu_custom_call.1} parent=11 // pred_check_branch
          %425 = sbr.rel (%p423) target = $region36
        $region35: #{tpu_custom_call.1} parent=11 // pred_region
          %427 = vsyncadd [#allocation12], 0
          %s428 = sshll.u32 %s7, 4
          %s429 = int_to_ptr.hbm [resolvable:$true] %s428
          %s430 = sshll.u32 [#allocation11], 4
          %s431 = int_to_ptr.vmem [resolvable:$true] %s430
          %436 = dma.hbm_to_vmem [thread:$0]  %s429, 8192, %s431, [#allocation12], 256, 256, 16
        $region36: #{tpu_custom_call.1} parent=11 // pred_fallthru
          _
        // Predicated region
        $region37: #{tpu_custom_call.1} parent=11 // pred_check
          %p437 = pneg %p237
        $region38: #{tpu_custom_call.1} parent=11 // pred_check_branch
          %439 = sbr.rel (%p437) target = $region40
        $region39: #{tpu_custom_call.1} parent=11 // pred_region
          %441 = vsyncadd [#allocation12], 0
          %s442 = sshll.u32 %s8, 4
          %s443 = int_to_ptr.hbm [resolvable:$true] %s442
          %s444 = sshll.u32 [#allocation13], 4
          %s445 = int_to_ptr.vmem [resolvable:$true] %s444
          %450 = dma.hbm_to_vmem [thread:$0]  %s443, 8192, %s445, [#allocation12], 256, 256, 16
        $region40: #{tpu_custom_call.1} parent=11 // pred_fallthru
          _
        // Predicated region
        $region41: #{tpu_custom_call.1} parent=11 // pred_check
          %p451 = pneg %p258
        $region42: #{tpu_custom_call.1} parent=11 // pred_check_branch
          %453 = sbr.rel (%p451) target = $region44
        $region43: #{tpu_custom_call.1} parent=11 // pred_region
          %455 = vsyncadd [#allocation15], 0
          %s456 = sshll.u32 %s9, 4
          %s457 = int_to_ptr.hbm [resolvable:$true] %s456
          %s458 = sshll.u32 [#allocation14], 4
          %s459 = int_to_ptr.vmem [resolvable:$true] %s458
          %464 = dma.hbm_to_vmem [thread:$0]  %s457, 8192, %s459, [#allocation15], 256, 256, 16
        $region44: #{tpu_custom_call.1} parent=11 // pred_fallthru
          _
      $region12: #{tpu_custom_call.1} parent=5 // pred_fallthru
        _
      %p465 = scmp.lt.s32.totalorder %s38, 2
      // Predicated region
      $region45: #{tpu_custom_call.1} parent=5 // pred_check
        %p466 = pneg %p465
      $region46: #{tpu_custom_call.1} parent=5 // pred_check_branch
        %468 = sbr.rel (%p466) target = $region48
      $region47: #{tpu_custom_call.1} parent=5 // pred_region
        // Predicated region
        $region49: #{tpu_custom_call.1} parent=47 // pred_check
          %p469 = pneg %p58
        $region50: #{tpu_custom_call.1} parent=47 // pred_check_branch
          %471 = sbr.rel (%p469) target = $region52
        $region51: #{tpu_custom_call.1} parent=47 // pred_region
          %s472 = sand.u32 %s48, 1
          %s473 = scalar_lea.sflag [#allocation3], %s472
          %s474 = sand.u32 %s48, 1
          %s475 = smul.addr %s474, 32
          %s476 = scalar_lea.vmem [#allocation2], %s475
          %s477 = smul.u32 2, %s38
          %479 = vsyncadd %s473, 0
          %s480 = smul.addr %s477, 2
          %s481 = smul.addr %s480, 8
          %s482 = scalar_lea.hbm %s0, %s481
          %s483 = sshll.u32 %s482, 4
          %s484 = int_to_ptr.hbm [resolvable:$true] %s483
          %s485 = sshll.u32 %s476, 4
          %s486 = int_to_ptr.vmem [resolvable:$true] %s485
          %491 = dma.hbm_to_vmem [thread:$0]  %s484, 512, %s486, %s473, 256, 256, 16
        $region52: #{tpu_custom_call.1} parent=47 // pred_fallthru
          _
        // Predicated region
        $region53: #{tpu_custom_call.1} parent=47 // pred_check
          %p492 = pneg %p84
        $region54: #{tpu_custom_call.1} parent=47 // pred_check_branch
          %494 = sbr.rel (%p492) target = $region56
        $region55: #{tpu_custom_call.1} parent=47 // pred_region
          %s495 = sand.u32 %s38, 1
          %s496 = scalar_lea.sflag [#allocation6], %s495
          %s497 = sand.u32 %s74, 1
          %s498 = smul.addr %s497, 32
          %s499 = scalar_lea.vmem [#allocation5], %s498
          %s500 = smul.u32 2, %s38
          %502 = vsyncadd %s496, 0
          %s503 = smul.addr %s500, 2
          %s504 = smul.addr %s503, 8
          %s505 = scalar_lea.hbm %s1, %s504
          %s506 = sshll.u32 %s505, 4
          %s507 = int_to_ptr.hbm [resolvable:$true] %s506
          %s508 = sshll.u32 %s499, 4
          %s509 = int_to_ptr.vmem [resolvable:$true] %s508
          %514 = dma.hbm_to_vmem [thread:$0]  %s507, 512, %s509, %s496, 256, 256, 16
        $region56: #{tpu_custom_call.1} parent=47 // pred_fallthru
          _
      $region48: #{tpu_custom_call.1} parent=5 // pred_fallthru
        _
      %p515 = scmp.le.s32.totalorder 1, %s38
      %p516 = scmp.lt.s32.totalorder %s38, 3
      %p517 = pnand %p515, %p516
      %p518 = pneg %p517
      // Predicated region
      $region57: #{tpu_custom_call.1} parent=5 // pred_check
        _
      $region58: #{tpu_custom_call.1} parent=5 // pred_check_branch
        %520 = sbr.rel (%p517) target = $region60
      $region59: #{tpu_custom_call.1} parent=5 // pred_region
        %s521 = ssub.s32 %s38, 1
        %s522 = sand.u32 %s51, 1
        %s523 = scalar_lea.sflag [#allocation3], %s522
        %s524 = sand.u32 %s51, 1
        %s525 = smul.addr %s524, 32
        %s526 = scalar_lea.vmem [#allocation2], %s525
        // Predicated region
        $region61: #{tpu_custom_call.1} parent=59 // pred_check
          %p527 = pneg %p64
        $region62: #{tpu_custom_call.1} parent=59 // pred_check_branch
          %529 = sbr.rel (%p527) target = $region64
        $region63: #{tpu_custom_call.1} parent=59 // pred_region
          %531 = dma.done %s523, 512
        $region64: #{tpu_custom_call.1} parent=59 // pred_fallthru
          _
        %s532 = sand.u32 %s43, 1
        %s533 = scalar_lea.sflag [#allocation6], %s532
        %s534 = sand.u32 %s77, 1
        %s535 = smul.addr %s534, 32
        %s536 = scalar_lea.vmem [#allocation5], %s535
        // Predicated region
        $region65: #{tpu_custom_call.1} parent=59 // pred_check
          %p537 = pneg %p90
        $region66: #{tpu_custom_call.1} parent=59 // pred_check_branch
          %539 = sbr.rel (%p537) target = $region68
        $region67: #{tpu_custom_call.1} parent=59 // pred_region
          %541 = dma.done %s533, 512
        $region68: #{tpu_custom_call.1} parent=59 // pred_fallthru
          _
        // Predicated region
        $region69: #{tpu_custom_call.1} parent=59 // pred_check
          %p542 = pneg %p111
        $region70: #{tpu_custom_call.1} parent=59 // pred_check_branch
          %544 = sbr.rel (%p542) target = $region72
        $region71: #{tpu_custom_call.1} parent=59 // pred_region
          %546 = dma.done [#allocation6], 8192
        $region72: #{tpu_custom_call.1} parent=59 // pred_fallthru
          _
        // Predicated region
        $region73: #{tpu_custom_call.1} parent=59 // pred_check
          %p547 = pneg %p132
        $region74: #{tpu_custom_call.1} parent=59 // pred_check_branch
          %549 = sbr.rel (%p547) target = $region76
        $region75: #{tpu_custom_call.1} parent=59 // pred_region
          %551 = dma.done [#allocation9], 8192
        $region76: #{tpu_custom_call.1} parent=59 // pred_fallthru
          _
        // Predicated region
        $region77: #{tpu_custom_call.1} parent=59 // pred_check
          %p552 = pneg %p195
        $region78: #{tpu_custom_call.1} parent=59 // pred_check_branch
          %554 = sbr.rel (%p552) target = $region80
        $region79: #{tpu_custom_call.1} parent=59 // pred_region
          %556 = dma.done [#allocation9], 32
        $region80: #{tpu_custom_call.1} parent=59 // pred_fallthru
          _
        // Predicated region
        $region81: #{tpu_custom_call.1} parent=59 // pred_check
          %p557 = pneg %p216
        $region82: #{tpu_custom_call.1} parent=59 // pred_check_branch
          %559 = sbr.rel (%p557) target = $region84
        $region83: #{tpu_custom_call.1} parent=59 // pred_region
          %561 = dma.done [#allocation12], 8192
        $region84: #{tpu_custom_call.1} parent=59 // pred_fallthru
          _
        // Predicated region
        $region85: #{tpu_custom_call.1} parent=59 // pred_check
          %p562 = pneg %p237
        $region86: #{tpu_custom_call.1} parent=59 // pred_check_branch
          %564 = sbr.rel (%p562) target = $region88
        $region87: #{tpu_custom_call.1} parent=59 // pred_region
          %566 = dma.done [#allocation12], 8192
        $region88: #{tpu_custom_call.1} parent=59 // pred_fallthru
          _
        // Predicated region
        $region89: #{tpu_custom_call.1} parent=59 // pred_check
          %p567 = pneg %p258
        $region90: #{tpu_custom_call.1} parent=59 // pred_check_branch
          %569 = sbr.rel (%p567) target = $region92
        $region91: #{tpu_custom_call.1} parent=59 // pred_region
          %571 = dma.done [#allocation15], 8192
        $region92: #{tpu_custom_call.1} parent=59 // pred_fallthru
          _
        %s572 = sand.u32 %s51, 1
        %s573 = scalar_lea.sflag [#allocation3], %s572
        %s574 = sand.u32 %s51, 1
        %s575 = smul.addr %s574, 32
        %s576 = scalar_lea.vmem [#allocation2], %s575
        %p577 = pneg %p64
        %p578 = pneg %p61
        %s579 = sand.u32 %s43, 1
        %s580 = scalar_lea.sflag [#allocation6], %s579
        %s581 = sand.u32 %s77, 1
        %s582 = smul.addr %s581, 32
        %s583 = scalar_lea.vmem [#allocation5], %s582
        %p584 = pneg %p90
        %p585 = pneg %p87
        %p586 = pneg %p111
        %p587 = pneg %p108
        %p588 = pneg %p132
        %p589 = pneg %p129
        %p590 = pneg %p153
        %p591 = pneg %p150
        %p592 = pneg %p174
        %p593 = pneg %p171
        %p594 = pneg %p195
        %p595 = pneg %p192
        %p596 = pneg %p216
        %p597 = pneg %p213
        %p598 = pneg %p237
        %p599 = pneg %p234
        %p600 = pneg %p258
        %p601 = pneg %p255
        %p602 = pneg %p284
        %p603 = pneg %p281
        %s604 = sand.u32 %s271, 1
        %s605 = scalar_lea.sflag [#allocation4], %s604
        %s606 = sand.u32 %s271, 1
        %s607 = smul.addr %s606, 32
        %s608 = scalar_lea.vmem [#allocation16], %s607
        %p609 = pneg %p310
        %p610 = pneg %p307
        %s611 = sand.u32 %s43, 1
        %s612 = scalar_lea.sflag [#allocation18], %s611
        %s613 = sand.u32 %s297, 1
        %s614 = smul.addr %s613, 32
        %s615 = scalar_lea.vmem [#allocation17], %s614
        %p616 = pneg %p336
        %p617 = pneg %p333
        %s618 = sand.u32 %s43, 1
        %s619 = scalar_lea.sflag [#allocation18], %s618
        %s620 = sand.u32 %s323, 1
        %s621 = smul.addr %s620, 32
        %s622 = scalar_lea.vmem [#allocation19], %s621
        %p623 = pneg %p362
        %p624 = pneg %p359
        %s625 = sand.u32 %s349, 1
        %s626 = scalar_lea.sflag [#allocation21], %s625
        %s627 = sand.u32 %s349, 1
        %s628 = smul.addr %s627, 32
        %s629 = scalar_lea.vmem [#allocation20], %s628
        %s630 = smul.u32 2, %s43
        %s631 = smul.u32 2, %s43
        %s632 = smul.u32 2, %s43
        %s633 = smul.u32 2, %s43
        %s634 = smul.u32 2, %s43
        %s635 = smul.u32 2, %s43
        %v636 = vld [vmem:[%s526] sm:$0xff]
        %v637 = vld [vmem:[%s526 + $0x8] sm:$0xff]
        %v638 = vld [vmem:[%s526 + $0x10] sm:$0xff]
        %v639 = vld [vmem:[%s526 + $0x18] sm:$0xff]
        %v640 = vld [vmem:[#allocation7] sm:$0xff]
        %v641 = vld [vmem:[#allocation7 + $0x8] sm:$0xff]
        %v642 = vld [vmem:[#allocation7 + $0x10] sm:$0xff]
        %v643 = vld [vmem:[#allocation7 + $0x18] sm:$0xff]
        %v644 = vld [vmem:[#allocation7 + $0x20] sm:$0xff]
        %v645 = vld [vmem:[#allocation7 + $0x28] sm:$0xff]
        %v646 = vld [vmem:[#allocation7 + $0x30] sm:$0xff]
        %v647 = vld [vmem:[#allocation7 + $0x38] sm:$0xff]
        %v648 = vld [vmem:[#allocation7 + $0x40] sm:$0xff]
        %v649 = vld [vmem:[#allocation7 + $0x48] sm:$0xff]
        %v650 = vld [vmem:[#allocation7 + $0x50] sm:$0xff]
        %v651 = vld [vmem:[#allocation7 + $0x58] sm:$0xff]
        %v652 = vld [vmem:[#allocation7 + $0x60] sm:$0xff]
        %v653 = vld [vmem:[#allocation7 + $0x68] sm:$0xff]
        %v654 = vld [vmem:[#allocation7 + $0x70] sm:$0xff]
        %v655 = vld [vmem:[#allocation7 + $0x78] sm:$0xff]
        %v656 = vld [vmem:[#allocation7 + $0x80] sm:$0xff]
        %v657 = vld [vmem:[#allocation7 + $0x88] sm:$0xff]
        %v658 = vld [vmem:[#allocation7 + $0x90] sm:$0xff]
        %v659 = vld [vmem:[#allocation7 + $0x98] sm:$0xff]
        %v660 = vld [vmem:[#allocation7 + $0xa0] sm:$0xff]
        %v661 = vld [vmem:[#allocation7 + $0xa8] sm:$0xff]
        %v662 = vld [vmem:[#allocation7 + $0xb0] sm:$0xff]
        %v663 = vld [vmem:[#allocation7 + $0xb8] sm:$0xff]
        %v664 = vld [vmem:[#allocation7 + $0xc0] sm:$0xff]
        %v665 = vld [vmem:[#allocation7 + $0xc8] sm:$0xff]
        %v666 = vld [vmem:[#allocation7 + $0xd0] sm:$0xff]
        %v667 = vld [vmem:[#allocation7 + $0xd8] sm:$0xff]
        %v668 = vld [vmem:[#allocation7 + $0xe0] sm:$0xff]
        %v669 = vld [vmem:[#allocation7 + $0xe8] sm:$0xff]
        %v670 = vld [vmem:[#allocation7 + $0xf0] sm:$0xff]
        %v671 = vld [vmem:[#allocation7 + $0xf8] sm:$0xff]
        %v672 = vld [vmem:[#allocation7 + $0x100] sm:$0xff]
        %v673 = vld [vmem:[#allocation7 + $0x108] sm:$0xff]
        %v674 = vld [vmem:[#allocation7 + $0x110] sm:$0xff]
        %v675 = vld [vmem:[#allocation7 + $0x118] sm:$0xff]
        %v676 = vld [vmem:[#allocation7 + $0x120] sm:$0xff]
        %v677 = vld [vmem:[#allocation7 + $0x128] sm:$0xff]
        %v678 = vld [vmem:[#allocation7 + $0x130] sm:$0xff]
        %v679 = vld [vmem:[#allocation7 + $0x138] sm:$0xff]
        %v680 = vld [vmem:[#allocation7 + $0x140] sm:$0xff]
        %v681 = vld [vmem:[#allocation7 + $0x148] sm:$0xff]
        %v682 = vld [vmem:[#allocation7 + $0x150] sm:$0xff]
        %v683 = vld [vmem:[#allocation7 + $0x158] sm:$0xff]
        %v684 = vld [vmem:[#allocation7 + $0x160] sm:$0xff]
        %v685 = vld [vmem:[#allocation7 + $0x168] sm:$0xff]
        %v686 = vld [vmem:[#allocation7 + $0x170] sm:$0xff]
        %v687 = vld [vmem:[#allocation7 + $0x178] sm:$0xff]
        %v688 = vld [vmem:[#allocation7 + $0x180] sm:$0xff]
        %v689 = vld [vmem:[#allocation7 + $0x188] sm:$0xff]
        %v690 = vld [vmem:[#allocation7 + $0x190] sm:$0xff]
        %v691 = vld [vmem:[#allocation7 + $0x198] sm:$0xff]
        %v692 = vld [vmem:[#allocation7 + $0x1a0] sm:$0xff]
        %v693 = vld [vmem:[#allocation7 + $0x1a8] sm:$0xff]
        %v694 = vld [vmem:[#allocation7 + $0x1b0] sm:$0xff]
        %v695 = vld [vmem:[#allocation7 + $0x1b8] sm:$0xff]
        %v696 = vld [vmem:[#allocation7 + $0x1c0] sm:$0xff]
        %v697 = vld [vmem:[#allocation7 + $0x1c8] sm:$0xff]
        %v698 = vld [vmem:[#allocation7 + $0x1d0] sm:$0xff]
        %v699 = vld [vmem:[#allocation7 + $0x1d8] sm:$0xff]
        %v700 = vld [vmem:[#allocation7 + $0x1e0] sm:$0xff]
        %v701 = vld [vmem:[#allocation7 + $0x1e8] sm:$0xff]
        %v702 = vld [vmem:[#allocation7 + $0x1f0] sm:$0xff]
        %v703 = vld [vmem:[#allocation7 + $0x1f8] sm:$0xff]
        %v704 = vld [vmem:[%s536] sm:$0xff]
        %v705 = vld [vmem:[%s536 + $0x8] sm:$0xff]
        %v706 = vld [vmem:[%s536 + $0x10] sm:$0xff]
        %v707 = vld [vmem:[%s536 + $0x18] sm:$0xff]
        %v708 = vld [vmem:[#allocation8] sm:$0xff]
        %v709 = vld [vmem:[#allocation8 + $0x8] sm:$0xff]
        %v710 = vld [vmem:[#allocation8 + $0x10] sm:$0xff]
        %v711 = vld [vmem:[#allocation8 + $0x18] sm:$0xff]
        %v712 = vld [vmem:[#allocation8 + $0x20] sm:$0xff]
        %v713 = vld [vmem:[#allocation8 + $0x28] sm:$0xff]
        %v714 = vld [vmem:[#allocation8 + $0x30] sm:$0xff]
        %v715 = vld [vmem:[#allocation8 + $0x38] sm:$0xff]
        %v716 = vld [vmem:[#allocation8 + $0x40] sm:$0xff]
        %v717 = vld [vmem:[#allocation8 + $0x48] sm:$0xff]
        %v718 = vld [vmem:[#allocation8 + $0x50] sm:$0xff]
        %v719 = vld [vmem:[#allocation8 + $0x58] sm:$0xff]
        %v720 = vld [vmem:[#allocation8 + $0x60] sm:$0xff]
        %v721 = vld [vmem:[#allocation8 + $0x68] sm:$0xff]
        %v722 = vld [vmem:[#allocation8 + $0x70] sm:$0xff]
        %v723 = vld [vmem:[#allocation8 + $0x78] sm:$0xff]
        %v724 = vld [vmem:[#allocation8 + $0x80] sm:$0xff]
        %v725 = vld [vmem:[#allocation8 + $0x88] sm:$0xff]
        %v726 = vld [vmem:[#allocation8 + $0x90] sm:$0xff]
        %v727 = vld [vmem:[#allocation8 + $0x98] sm:$0xff]
        %v728 = vld [vmem:[#allocation8 + $0xa0] sm:$0xff]
        %v729 = vld [vmem:[#allocation8 + $0xa8] sm:$0xff]
        %v730 = vld [vmem:[#allocation8 + $0xb0] sm:$0xff]
        %v731 = vld [vmem:[#allocation8 + $0xb8] sm:$0xff]
        %v732 = vld [vmem:[#allocation8 + $0xc0] sm:$0xff]
        %v733 = vld [vmem:[#allocation8 + $0xc8] sm:$0xff]
        %v734 = vld [vmem:[#allocation8 + $0xd0] sm:$0xff]
        %v735 = vld [vmem:[#allocation8 + $0xd8] sm:$0xff]
        %v736 = vld [vmem:[#allocation8 + $0xe0] sm:$0xff]
        %v737 = vld [vmem:[#allocation8 + $0xe8] sm:$0xff]
        %v738 = vld [vmem:[#allocation8 + $0xf0] sm:$0xff]
        %v739 = vld [vmem:[#allocation8 + $0xf8] sm:$0xff]
        %v740 = vld [vmem:[#allocation8 + $0x100] sm:$0xff]
        %v741 = vld [vmem:[#allocation8 + $0x108] sm:$0xff]
        %v742 = vld [vmem:[#allocation8 + $0x110] sm:$0xff]
        %v743 = vld [vmem:[#allocation8 + $0x118] sm:$0xff]
        %v744 = vld [vmem:[#allocation8 + $0x120] sm:$0xff]
        %v745 = vld [vmem:[#allocation8 + $0x128] sm:$0xff]
        %v746 = vld [vmem:[#allocation8 + $0x130] sm:$0xff]
        %v747 = vld [vmem:[#allocation8 + $0x138] sm:$0xff]
        %v748 = vld [vmem:[#allocation8 + $0x140] sm:$0xff]
        %v749 = vld [vmem:[#allocation8 + $0x148] sm:$0xff]
        %v750 = vld [vmem:[#allocation8 + $0x150] sm:$0xff]
        %v751 = vld [vmem:[#allocation8 + $0x158] sm:$0xff]
        %v752 = vld [vmem:[#allocation8 + $0x160] sm:$0xff]
        %v753 = vld [vmem:[#allocation8 + $0x168] sm:$0xff]
        %v754 = vld [vmem:[#allocation8 + $0x170] sm:$0xff]
        %v755 = vld [vmem:[#allocation8 + $0x178] sm:$0xff]
        %v756 = vld [vmem:[#allocation8 + $0x180] sm:$0xff]
        %v757 = vld [vmem:[#allocation8 + $0x188] sm:$0xff]
        %v758 = vld [vmem:[#allocation8 + $0x190] sm:$0xff]
        %v759 = vld [vmem:[#allocation8 + $0x198] sm:$0xff]
        %v760 = vld [vmem:[#allocation8 + $0x1a0] sm:$0xff]
        %v761 = vld [vmem:[#allocation8 + $0x1a8] sm:$0xff]
        %v762 = vld [vmem:[#allocation8 + $0x1b0] sm:$0xff]
        %v763 = vld [vmem:[#allocation8 + $0x1b8] sm:$0xff]
        %v764 = vld [vmem:[#allocation8 + $0x1c0] sm:$0xff]
        %v765 = vld [vmem:[#allocation8 + $0x1c8] sm:$0xff]
        %v766 = vld [vmem:[#allocation8 + $0x1d0] sm:$0xff]
        %v767 = vld [vmem:[#allocation8 + $0x1d8] sm:$0xff]
        %v768 = vld [vmem:[#allocation8 + $0x1e0] sm:$0xff]
        %v769 = vld [vmem:[#allocation8 + $0x1e8] sm:$0xff]
        %v770 = vld [vmem:[#allocation8 + $0x1f0] sm:$0xff]
        %v771 = vld [vmem:[#allocation8 + $0x1f8] sm:$0xff]
        %772 = vmatpush.msra.mxu0 %v738
        %773 = vmatpush.msra.mxu0 %v736
        %774 = vmatpush.msra.mxu0 %v734
        %775 = vmatpush.msra.mxu0 %v732
        %776 = vmatpush.msra.mxu0 %v730
        %777 = vmatpush.msra.mxu0 %v728
        %778 = vmatpush.msra.mxu0 %v726
        %779 = vmatpush.msra.mxu0 %v724
        %780 = vmatpush.msra.mxu0 %v722
        %781 = vmatpush.msra.mxu0 %v720
        %782 = vmatpush.msra.mxu0 %v718
        %783 = vmatpush.msra.mxu0 %v716
        %784 = vmatpush.msra.mxu0 %v714
        %785 = vmatpush.msra.mxu0 %v712
        %786 = vmatpush.msra.mxu0 %v710
        %787 = vmatpush.msra.mxu0 %v708
        %788 = vmatmul.f32.gmra.mxu0 %v704
        %v789 = vpop.f32.mrf.mxu0
        %v790 = vadd.f32 0.0, %v789
        %791 = vmatmul.f32.gmra.mxu0 %v706
        %v792 = vpop.f32.mrf.mxu0
        %v793 = vadd.f32 0.0, %v792
        %794 = vdwg.mxu0
        %795 = vmatpush.msra.mxu0 %v770
        %796 = vmatpush.msra.mxu0 %v768
        %797 = vmatpush.msra.mxu0 %v766
        %798 = vmatpush.msra.mxu0 %v764
        %799 = vmatpush.msra.mxu0 %v762
        %800 = vmatpush.msra.mxu0 %v760
        %801 = vmatpush.msra.mxu0 %v758
        %802 = vmatpush.msra.mxu0 %v756
        %803 = vmatpush.msra.mxu0 %v754
        %804 = vmatpush.msra.mxu0 %v752
        %805 = vmatpush.msra.mxu0 %v750
        %806 = vmatpush.msra.mxu0 %v748
        %807 = vmatpush.msra.mxu0 %v746
        %808 = vmatpush.msra.mxu0 %v744
        %809 = vmatpush.msra.mxu0 %v742
        %810 = vmatpush.msra.mxu0 %v740
        %811 = vmatmul.f32.gmra.mxu0 %v705
        %v812 = vpop.f32.mrf.mxu0
        %v813 = vadd.f32 %v790, %v812
        %814 = vmatmul.f32.gmra.mxu0 %v707
        %v815 = vpop.f32.mrf.mxu0
        %v816 = vadd.f32 %v793, %v815
        %817 = vdwg.mxu0
        %818 = vmatpush.msra.mxu0 %v739
        %819 = vmatpush.msra.mxu0 %v737
        %820 = vmatpush.msra.mxu0 %v735
        %821 = vmatpush.msra.mxu0 %v733
        %822 = vmatpush.msra.mxu0 %v731
        %823 = vmatpush.msra.mxu0 %v729
        %824 = vmatpush.msra.mxu0 %v727
        %825 = vmatpush.msra.mxu0 %v725
        %826 = vmatpush.msra.mxu0 %v723
        %827 = vmatpush.msra.mxu0 %v721
        %828 = vmatpush.msra.mxu0 %v719
        %829 = vmatpush.msra.mxu0 %v717
        %830 = vmatpush.msra.mxu0 %v715
        %831 = vmatpush.msra.mxu0 %v713
        %832 = vmatpush.msra.mxu0 %v711
        %833 = vmatpush.msra.mxu0 %v709
        %834 = vmatmul.f32.gmra.mxu0 %v704
        %v835 = vpop.f32.mrf.mxu0
        %v836 = vadd.f32 0.0, %v835
        %837 = vmatmul.f32.gmra.mxu0 %v706
        %v838 = vpop.f32.mrf.mxu0
        %v839 = vadd.f32 0.0, %v838
        %840 = vdwg.mxu0
        %841 = vmatpush.msra.mxu0 %v771
        %842 = vmatpush.msra.mxu0 %v769
        %843 = vmatpush.msra.mxu0 %v767
        %844 = vmatpush.msra.mxu0 %v765
        %845 = vmatpush.msra.mxu0 %v763
        %846 = vmatpush.msra.mxu0 %v761
        %847 = vmatpush.msra.mxu0 %v759
        %848 = vmatpush.msra.mxu0 %v757
        %849 = vmatpush.msra.mxu0 %v755
        %850 = vmatpush.msra.mxu0 %v753
        %851 = vmatpush.msra.mxu0 %v751
        %852 = vmatpush.msra.mxu0 %v749
        %853 = vmatpush.msra.mxu0 %v747
        %854 = vmatpush.msra.mxu0 %v745
        %855 = vmatpush.msra.mxu0 %v743
        %856 = vmatpush.msra.mxu0 %v741
        %857 = vmatmul.f32.gmra.mxu0 %v705
        %v858 = vpop.f32.mrf.mxu0
        %v859 = vadd.f32 %v836, %v858
        %860 = vmatmul.f32.gmra.mxu0 %v707
        %v861 = vpop.f32.mrf.mxu0
        %v862 = vadd.f32 %v839, %v861
        %863 = vdwg.mxu0
        %864 = vmatpush.msra.mxu0 %v670
        %865 = vmatpush.msra.mxu0 %v668
        %866 = vmatpush.msra.mxu0 %v666
        %867 = vmatpush.msra.mxu0 %v664
        %868 = vmatpush.msra.mxu0 %v662
        %869 = vmatpush.msra.mxu0 %v660
        %870 = vmatpush.msra.mxu0 %v658
        %871 = vmatpush.msra.mxu0 %v656
        %872 = vmatpush.msra.mxu0 %v654
        %873 = vmatpush.msra.mxu0 %v652
        %874 = vmatpush.msra.mxu0 %v650
        %875 = vmatpush.msra.mxu0 %v648
        %876 = vmatpush.msra.mxu0 %v646
        %877 = vmatpush.msra.mxu0 %v644
        %878 = vmatpush.msra.mxu0 %v642
        %879 = vmatpush.msra.mxu0 %v640
        %880 = vmatmul.f32.gmra.mxu0 %v636
        %v881 = vpop.f32.mrf.mxu0
        %v882 = vadd.f32 %v813, %v881
        %883 = vmatmul.f32.gmra.mxu0 %v638
        %v884 = vpop.f32.mrf.mxu0
        %v885 = vadd.f32 %v816, %v884
        %886 = vdwg.mxu0
        %887 = vmatpush.msra.mxu0 %v702
        %888 = vmatpush.msra.mxu0 %v700
        %889 = vmatpush.msra.mxu0 %v698
        %890 = vmatpush.msra.mxu0 %v696
        %891 = vmatpush.msra.mxu0 %v694
        %892 = vmatpush.msra.mxu0 %v692
        %893 = vmatpush.msra.mxu0 %v690
        %894 = vmatpush.msra.mxu0 %v688
        %895 = vmatpush.msra.mxu0 %v686
        %896 = vmatpush.msra.mxu0 %v684
        %897 = vmatpush.msra.mxu0 %v682
        %898 = vmatpush.msra.mxu0 %v680
        %899 = vmatpush.msra.mxu0 %v678
        %900 = vmatpush.msra.mxu0 %v676
        %901 = vmatpush.msra.mxu0 %v674
        %902 = vmatpush.msra.mxu0 %v672
        %903 = vmatmul.f32.gmra.mxu0 %v637
        %v904 = vpop.f32.mrf.mxu0
        %v905 = vadd.f32 %v882, %v904
        %906 = vmatmul.f32.gmra.mxu0 %v639
        %v907 = vpop.f32.mrf.mxu0
        %v908 = vadd.f32 %v885, %v907
        %909 = vdwg.mxu0
        %910 = vmatpush.msra.mxu0 %v671
        %911 = vmatpush.msra.mxu0 %v669
        %912 = vmatpush.msra.mxu0 %v667
        %913 = vmatpush.msra.mxu0 %v665
        %914 = vmatpush.msra.mxu0 %v663
        %915 = vmatpush.msra.mxu0 %v661
        %916 = vmatpush.msra.mxu0 %v659
        %917 = vmatpush.msra.mxu0 %v657
        %918 = vmatpush.msra.mxu0 %v655
        %919 = vmatpush.msra.mxu0 %v653
        %920 = vmatpush.msra.mxu0 %v651
        %921 = vmatpush.msra.mxu0 %v649
        %922 = vmatpush.msra.mxu0 %v647
        %923 = vmatpush.msra.mxu0 %v645
        %924 = vmatpush.msra.mxu0 %v643
        %925 = vmatpush.msra.mxu0 %v641
        %926 = vmatmul.f32.gmra.mxu0 %v636
        %v927 = vpop.f32.mrf.mxu0
        %v928 = vadd.f32 %v859, %v927
        %929 = vmatmul.f32.gmra.mxu0 %v638
        %v930 = vpop.f32.mrf.mxu0
        %v931 = vadd.f32 %v862, %v930
        %932 = vdwg.mxu0
        %933 = vmatpush.msra.mxu0 %v703
        %934 = vmatpush.msra.mxu0 %v701
        %935 = vmatpush.msra.mxu0 %v699
        %936 = vmatpush.msra.mxu0 %v697
        %937 = vmatpush.msra.mxu0 %v695
        %938 = vmatpush.msra.mxu0 %v693
        %939 = vmatpush.msra.mxu0 %v691
        %940 = vmatpush.msra.mxu0 %v689
        %941 = vmatpush.msra.mxu0 %v687
        %942 = vmatpush.msra.mxu0 %v685
        %943 = vmatpush.msra.mxu0 %v683
        %944 = vmatpush.msra.mxu0 %v681
        %945 = vmatpush.msra.mxu0 %v679
        %946 = vmatpush.msra.mxu0 %v677
        %947 = vmatpush.msra.mxu0 %v675
        %948 = vmatpush.msra.mxu0 %v673
        %949 = vmatmul.f32.gmra.mxu0 %v637
        %v950 = vpop.f32.mrf.mxu0
        %v951 = vadd.f32 %v928, %v950
        %952 = vmatmul.f32.gmra.mxu0 %v639
        %v953 = vpop.f32.mrf.mxu0
        %v954 = vadd.f32 %v931, %v953
        %955 = vdwg.mxu0
        %v956 = vld [vmem:[%s4] sm:$0x3]
        %v958 = vperm.slane %v956, 0
        %v959 = vperm.slane %v956, 1
        %v962 = vadd.f32 %v905, %v958
        %v963 = vadd.f32 %v951, %v959
        %v964 = vadd.f32 %v908, %v958
        %v965 = vadd.f32 %v954, %v959
        %966 = vst [vmem:[%s608] sm:$0xff] %v962
        %967 = vst [vmem:[%s608 + $0x8] sm:$0xff] %v963
        %968 = vst [vmem:[%s608 + $0x10] sm:$0xff] %v964
        %969 = vst [vmem:[%s608 + $0x18] sm:$0xff] %v965
        %v970 = vld [vmem:[%s5] sm:$0x3]
        %v971 = vld [vmem:[#allocation10] sm:$0x3]
        %v972 = vadd.f32 %v962, %v963
        %973 = vadd.xlane.f32.xlu0 %v972
        %v974 = vpop.xlane.xlu0 %973
        %v975 = vadd.f32 %v964, %v965
        %976 = vadd.xlane.f32.xlu0 %v975
        %v977 = vpop.xlane.xlu0 %976
        %v978 = vrcp.pop 256.0
        %v979 = vmul.f32 256.0, %v978
        %v980 = vsub.f32 1.0, %v979
        %v981 = vmul.f32 %v978, %v980
        %v982 = vadd.f32 %v978, %v981
        %vm983 = vweird.f32 %v978
        %v984 = vsel %vm983, %v978, %v982
        %v985 = vmul.f32 %v974, %v984
        %v986 = vmul.f32 %v977, %v984
        %v987 = vsub.f32 %v962, %v985
        %v988 = vsub.f32 %v963, %v985
        %v989 = vsub.f32 %v964, %v986
        %v990 = vsub.f32 %v965, %v986
        %v991 = vmul.f32 %v987, %v987
        %v992 = vmul.f32 %v988, %v988
        %v993 = vmul.f32 %v989, %v989
        %v994 = vmul.f32 %v990, %v990
        %v995 = vadd.f32 %v991, %v992
        %996 = vadd.xlane.f32.xlu0 %v995
        %v997 = vpop.xlane.xlu0 %996
        %v998 = vadd.f32 %v993, %v994
        %999 = vadd.xlane.f32.xlu0 %v998
        %v1000 = vpop.xlane.xlu0 %999
        %v1001 = vmul.f32 %v997, %v984
        %v1002 = vmul.f32 %v1000, %v984
        %v1003 = vadd.f32 %v1001, 1e-05
        %v1004 = vadd.f32 %v1002, 1e-05
        %v1005 = vrsqrt.pop %v1003
        %v1006 = vmul.f32 %v1005, %v1003
        %v1007 = vmul.f32 %v1006, %v1005
        %v1008 = vmul.f32 0.5, %v1007
        %v1009 = vsub.f32 1.5, %v1008
        %v1010 = vmul.f32 %v1005, %v1009
        %vm1011 = vweird.f32 %v1003
        %vm1012 = vweird.f32 %v1005
        %vm1013 = vmor %vm1011, %vm1012
        %v1014 = vsel %vm1013, %v1005, %v1010
        %v1015 = vrsqrt.pop %v1004
        %v1016 = vmul.f32 %v1015, %v1004
        %v1017 = vmul.f32 %v1016, %v1015
        %v1018 = vmul.f32 0.5, %v1017
        %v1019 = vsub.f32 1.5, %v1018
        %v1020 = vmul.f32 %v1015, %v1019
        %vm1021 = vweird.f32 %v1004
        %vm1022 = vweird.f32 %v1015
        %vm1023 = vmor %vm1021, %vm1022
        %v1024 = vsel %vm1023, %v1015, %v1020
        %v1025 = vmul.f32 %v987, %v1014
        %v1026 = vmul.f32 %v988, %v1014
        %v1027 = vmul.f32 %v989, %v1024
        %v1028 = vmul.f32 %v990, %v1024
        %v1030 = vperm.slane %v970, 0
        %v1031 = vperm.slane %v970, 1
        %v1034 = vmul.f32 %v1025, %v1030
        %v1035 = vmul.f32 %v1026, %v1031
        %v1036 = vmul.f32 %v1027, %v1030
        %v1037 = vmul.f32 %v1028, %v1031
        %v1039 = vperm.slane %v971, 0
        %v1040 = vperm.slane %v971, 1
        %v1043 = vadd.f32 %v1034, %v1039
        %v1044 = vadd.f32 %v1035, %v1040
        %v1045 = vadd.f32 %v1036, %v1039
        %v1046 = vadd.f32 %v1037, %v1040
        %v1047 = vld [vmem:[#allocation11] sm:$0xff]
        %v1048 = vld [vmem:[#allocation11 + $0x8] sm:$0xff]
        %v1049 = vld [vmem:[#allocation11 + $0x10] sm:$0xff]
        %v1050 = vld [vmem:[#allocation11 + $0x18] sm:$0xff]
        %v1051 = vld [vmem:[#allocation11 + $0x20] sm:$0xff]
        %v1052 = vld [vmem:[#allocation11 + $0x28] sm:$0xff]
        %v1053 = vld [vmem:[#allocation11 + $0x30] sm:$0xff]
        %v1054 = vld [vmem:[#allocation11 + $0x38] sm:$0xff]
        %v1055 = vld [vmem:[#allocation11 + $0x40] sm:$0xff]
        %v1056 = vld [vmem:[#allocation11 + $0x48] sm:$0xff]
        %v1057 = vld [vmem:[#allocation11 + $0x50] sm:$0xff]
        %v1058 = vld [vmem:[#allocation11 + $0x58] sm:$0xff]
        %v1059 = vld [vmem:[#allocation11 + $0x60] sm:$0xff]
        %v1060 = vld [vmem:[#allocation11 + $0x68] sm:$0xff]
        %v1061 = vld [vmem:[#allocation11 + $0x70] sm:$0xff]
        %v1062 = vld [vmem:[#allocation11 + $0x78] sm:$0xff]
        %v1063 = vld [vmem:[#allocation11 + $0x80] sm:$0xff]
        %v1064 = vld [vmem:[#allocation11 + $0x88] sm:$0xff]
        %v1065 = vld [vmem:[#allocation11 + $0x90] sm:$0xff]
        %v1066 = vld [vmem:[#allocation11 + $0x98] sm:$0xff]
        %v1067 = vld [vmem:[#allocation11 + $0xa0] sm:$0xff]
        %v1068 = vld [vmem:[#allocation11 + $0xa8] sm:$0xff]
        %v1069 = vld [vmem:[#allocation11 + $0xb0] sm:$0xff]
        %v1070 = vld [vmem:[#allocation11 + $0xb8] sm:$0xff]
        %v1071 = vld [vmem:[#allocation11 + $0xc0] sm:$0xff]
        %v1072 = vld [vmem:[#allocation11 + $0xc8] sm:$0xff]
        %v1073 = vld [vmem:[#allocation11 + $0xd0] sm:$0xff]
        %v1074 = vld [vmem:[#allocation11 + $0xd8] sm:$0xff]
        %v1075 = vld [vmem:[#allocation11 + $0xe0] sm:$0xff]
        %v1076 = vld [vmem:[#allocation11 + $0xe8] sm:$0xff]
        %v1077 = vld [vmem:[#allocation11 + $0xf0] sm:$0xff]
        %v1078 = vld [vmem:[#allocation11 + $0xf8] sm:$0xff]
        %v1079 = vld [vmem:[#allocation11 + $0x100] sm:$0xff]
        %v1080 = vld [vmem:[#allocation11 + $0x108] sm:$0xff]
        %v1081 = vld [vmem:[#allocation11 + $0x110] sm:$0xff]
        %v1082 = vld [vmem:[#allocation11 + $0x118] sm:$0xff]
        %v1083 = vld [vmem:[#allocation11 + $0x120] sm:$0xff]
        %v1084 = vld [vmem:[#allocation11 + $0x128] sm:$0xff]
        %v1085 = vld [vmem:[#allocation11 + $0x130] sm:$0xff]
        %v1086 = vld [vmem:[#allocation11 + $0x138] sm:$0xff]
        %v1087 = vld [vmem:[#allocation11 + $0x140] sm:$0xff]
        %v1088 = vld [vmem:[#allocation11 + $0x148] sm:$0xff]
        %v1089 = vld [vmem:[#allocation11 + $0x150] sm:$0xff]
        %v1090 = vld [vmem:[#allocation11 + $0x158] sm:$0xff]
        %v1091 = vld [vmem:[#allocation11 + $0x160] sm:$0xff]
        %v1092 = vld [vmem:[#allocation11 + $0x168] sm:$0xff]
        %v1093 = vld [vmem:[#allocation11 + $0x170] sm:$0xff]
        %v1094 = vld [vmem:[#allocation11 + $0x178] sm:$0xff]
        %v1095 = vld [vmem:[#allocation11 + $0x180] sm:$0xff]
        %v1096 = vld [vmem:[#allocation11 + $0x188] sm:$0xff]
        %v1097 = vld [vmem:[#allocation11 + $0x190] sm:$0xff]
        %v1098 = vld [vmem:[#allocation11 + $0x198] sm:$0xff]
        %v1099 = vld [vmem:[#allocation11 + $0x1a0] sm:$0xff]
        %v1100 = vld [vmem:[#allocation11 + $0x1a8] sm:$0xff]
        %v1101 = vld [vmem:[#allocation11 + $0x1b0] sm:$0xff]
        %v1102 = vld [vmem:[#allocation11 + $0x1b8] sm:$0xff]
        %v1103 = vld [vmem:[#allocation11 + $0x1c0] sm:$0xff]
        %v1104 = vld [vmem:[#allocation11 + $0x1c8] sm:$0xff]
        %v1105 = vld [vmem:[#allocation11 + $0x1d0] sm:$0xff]
        %v1106 = vld [vmem:[#allocation11 + $0x1d8] sm:$0xff]
        %v1107 = vld [vmem:[#allocation11 + $0x1e0] sm:$0xff]
        %v1108 = vld [vmem:[#allocation11 + $0x1e8] sm:$0xff]
        %v1109 = vld [vmem:[#allocation11 + $0x1f0] sm:$0xff]
        %v1110 = vld [vmem:[#allocation11 + $0x1f8] sm:$0xff]
        %1111 = vmatpush.msra.mxu0 %v1077
        %1112 = vmatpush.msra.mxu0 %v1075
        %1113 = vmatpush.msra.mxu0 %v1073
        %1114 = vmatpush.msra.mxu0 %v1071
        %1115 = vmatpush.msra.mxu0 %v1069
        %1116 = vmatpush.msra.mxu0 %v1067
        %1117 = vmatpush.msra.mxu0 %v1065
        %1118 = vmatpush.msra.mxu0 %v1063
        %1119 = vmatpush.msra.mxu0 %v1061
        %1120 = vmatpush.msra.mxu0 %v1059
        %1121 = vmatpush.msra.mxu0 %v1057
        %1122 = vmatpush.msra.mxu0 %v1055
        %1123 = vmatpush.msra.mxu0 %v1053
        %1124 = vmatpush.msra.mxu0 %v1051
        %1125 = vmatpush.msra.mxu0 %v1049
        %1126 = vmatpush.msra.mxu0 %v1047
        %1127 = vmatmul.f32.gmra.mxu0 %v1043
        %v1128 = vpop.f32.mrf.mxu0
        %v1129 = vadd.f32 0.0, %v1128
        %1130 = vmatmul.f32.gmra.mxu0 %v1045
        %v1131 = vpop.f32.mrf.mxu0
        %v1132 = vadd.f32 0.0, %v1131
        %1133 = vdwg.mxu0
        %1134 = vmatpush.msra.mxu0 %v1109
        %1135 = vmatpush.msra.mxu0 %v1107
        %1136 = vmatpush.msra.mxu0 %v1105
        %1137 = vmatpush.msra.mxu0 %v1103
        %1138 = vmatpush.msra.mxu0 %v1101
        %1139 = vmatpush.msra.mxu0 %v1099
        %1140 = vmatpush.msra.mxu0 %v1097
        %1141 = vmatpush.msra.mxu0 %v1095
        %1142 = vmatpush.msra.mxu0 %v1093
        %1143 = vmatpush.msra.mxu0 %v1091
        %1144 = vmatpush.msra.mxu0 %v1089
        %1145 = vmatpush.msra.mxu0 %v1087
        %1146 = vmatpush.msra.mxu0 %v1085
        %1147 = vmatpush.msra.mxu0 %v1083
        %1148 = vmatpush.msra.mxu0 %v1081
        %1149 = vmatpush.msra.mxu0 %v1079
        %1150 = vmatmul.f32.gmra.mxu0 %v1044
        %v1151 = vpop.f32.mrf.mxu0
        %v1152 = vadd.f32 %v1129, %v1151
        %1153 = vmatmul.f32.gmra.mxu0 %v1046
        %v1154 = vpop.f32.mrf.mxu0
        %v1155 = vadd.f32 %v1132, %v1154
        %1156 = vdwg.mxu0
        %1157 = vmatpush.msra.mxu0 %v1078
        %1158 = vmatpush.msra.mxu0 %v1076
        %1159 = vmatpush.msra.mxu0 %v1074
        %1160 = vmatpush.msra.mxu0 %v1072
        %1161 = vmatpush.msra.mxu0 %v1070
        %1162 = vmatpush.msra.mxu0 %v1068
        %1163 = vmatpush.msra.mxu0 %v1066
        %1164 = vmatpush.msra.mxu0 %v1064
        %1165 = vmatpush.msra.mxu0 %v1062
        %1166 = vmatpush.msra.mxu0 %v1060
        %1167 = vmatpush.msra.mxu0 %v1058
        %1168 = vmatpush.msra.mxu0 %v1056
        %1169 = vmatpush.msra.mxu0 %v1054
        %1170 = vmatpush.msra.mxu0 %v1052
        %1171 = vmatpush.msra.mxu0 %v1050
        %1172 = vmatpush.msra.mxu0 %v1048
        %1173 = vmatmul.f32.gmra.mxu0 %v1043
        %v1174 = vpop.f32.mrf.mxu0
        %v1175 = vadd.f32 0.0, %v1174
        %1176 = vmatmul.f32.gmra.mxu0 %v1045
        %v1177 = vpop.f32.mrf.mxu0
        %v1178 = vadd.f32 0.0, %v1177
        %1179 = vdwg.mxu0
        %1180 = vmatpush.msra.mxu0 %v1110
        %1181 = vmatpush.msra.mxu0 %v1108
        %1182 = vmatpush.msra.mxu0 %v1106
        %1183 = vmatpush.msra.mxu0 %v1104
        %1184 = vmatpush.msra.mxu0 %v1102
        %1185 = vmatpush.msra.mxu0 %v1100
        %1186 = vmatpush.msra.mxu0 %v1098
        %1187 = vmatpush.msra.mxu0 %v1096
        %1188 = vmatpush.msra.mxu0 %v1094
        %1189 = vmatpush.msra.mxu0 %v1092
        %1190 = vmatpush.msra.mxu0 %v1090
        %1191 = vmatpush.msra.mxu0 %v1088
        %1192 = vmatpush.msra.mxu0 %v1086
        %1193 = vmatpush.msra.mxu0 %v1084
        %1194 = vmatpush.msra.mxu0 %v1082
        %1195 = vmatpush.msra.mxu0 %v1080
        %1196 = vmatmul.f32.gmra.mxu0 %v1044
        %v1197 = vpop.f32.mrf.mxu0
        %v1198 = vadd.f32 %v1175, %v1197
        %1199 = vmatmul.f32.gmra.mxu0 %v1046
        %v1200 = vpop.f32.mrf.mxu0
        %v1201 = vadd.f32 %v1178, %v1200
        %1202 = vdwg.mxu0
        %1203 = vst [vmem:[%s615] sm:$0xff] %v1152
        %1204 = vst [vmem:[%s615 + $0x8] sm:$0xff] %v1198
        %1205 = vst [vmem:[%s615 + $0x10] sm:$0xff] %v1155
        %1206 = vst [vmem:[%s615 + $0x18] sm:$0xff] %v1201
        %v1207 = vld [vmem:[#allocation13] sm:$0xff]
        %v1208 = vld [vmem:[#allocation13 + $0x8] sm:$0xff]
        %v1209 = vld [vmem:[#allocation13 + $0x10] sm:$0xff]
        %v1210 = vld [vmem:[#allocation13 + $0x18] sm:$0xff]
        %v1211 = vld [vmem:[#allocation13 + $0x20] sm:$0xff]
        %v1212 = vld [vmem:[#allocation13 + $0x28] sm:$0xff]
        %v1213 = vld [vmem:[#allocation13 + $0x30] sm:$0xff]
        %v1214 = vld [vmem:[#allocation13 + $0x38] sm:$0xff]
        %v1215 = vld [vmem:[#allocation13 + $0x40] sm:$0xff]
        %v1216 = vld [vmem:[#allocation13 + $0x48] sm:$0xff]
        %v1217 = vld [vmem:[#allocation13 + $0x50] sm:$0xff]
        %v1218 = vld [vmem:[#allocation13 + $0x58] sm:$0xff]
        %v1219 = vld [vmem:[#allocation13 + $0x60] sm:$0xff]
        %v1220 = vld [vmem:[#allocation13 + $0x68] sm:$0xff]
        %v1221 = vld [vmem:[#allocation13 + $0x70] sm:$0xff]
        %v1222 = vld [vmem:[#allocation13 + $0x78] sm:$0xff]
        %v1223 = vld [vmem:[#allocation13 + $0x80] sm:$0xff]
        %v1224 = vld [vmem:[#allocation13 + $0x88] sm:$0xff]
        %v1225 = vld [vmem:[#allocation13 + $0x90] sm:$0xff]
        %v1226 = vld [vmem:[#allocation13 + $0x98] sm:$0xff]
        %v1227 = vld [vmem:[#allocation13 + $0xa0] sm:$0xff]
        %v1228 = vld [vmem:[#allocation13 + $0xa8] sm:$0xff]
        %v1229 = vld [vmem:[#allocation13 + $0xb0] sm:$0xff]
        %v1230 = vld [vmem:[#allocation13 + $0xb8] sm:$0xff]
        %v1231 = vld [vmem:[#allocation13 + $0xc0] sm:$0xff]
        %v1232 = vld [vmem:[#allocation13 + $0xc8] sm:$0xff]
        %v1233 = vld [vmem:[#allocation13 + $0xd0] sm:$0xff]
        %v1234 = vld [vmem:[#allocation13 + $0xd8] sm:$0xff]
        %v1235 = vld [vmem:[#allocation13 + $0xe0] sm:$0xff]
        %v1236 = vld [vmem:[#allocation13 + $0xe8] sm:$0xff]
        %v1237 = vld [vmem:[#allocation13 + $0xf0] sm:$0xff]
        %v1238 = vld [vmem:[#allocation13 + $0xf8] sm:$0xff]
        %v1239 = vld [vmem:[#allocation13 + $0x100] sm:$0xff]
        %v1240 = vld [vmem:[#allocation13 + $0x108] sm:$0xff]
        %v1241 = vld [vmem:[#allocation13 + $0x110] sm:$0xff]
        %v1242 = vld [vmem:[#allocation13 + $0x118] sm:$0xff]
        %v1243 = vld [vmem:[#allocation13 + $0x120] sm:$0xff]
        %v1244 = vld [vmem:[#allocation13 + $0x128] sm:$0xff]
        %v1245 = vld [vmem:[#allocation13 + $0x130] sm:$0xff]
        %v1246 = vld [vmem:[#allocation13 + $0x138] sm:$0xff]
        %v1247 = vld [vmem:[#allocation13 + $0x140] sm:$0xff]
        %v1248 = vld [vmem:[#allocation13 + $0x148] sm:$0xff]
        %v1249 = vld [vmem:[#allocation13 + $0x150] sm:$0xff]
        %v1250 = vld [vmem:[#allocation13 + $0x158] sm:$0xff]
        %v1251 = vld [vmem:[#allocation13 + $0x160] sm:$0xff]
        %v1252 = vld [vmem:[#allocation13 + $0x168] sm:$0xff]
        %v1253 = vld [vmem:[#allocation13 + $0x170] sm:$0xff]
        %v1254 = vld [vmem:[#allocation13 + $0x178] sm:$0xff]
        %v1255 = vld [vmem:[#allocation13 + $0x180] sm:$0xff]
        %v1256 = vld [vmem:[#allocation13 + $0x188] sm:$0xff]
        %v1257 = vld [vmem:[#allocation13 + $0x190] sm:$0xff]
        %v1258 = vld [vmem:[#allocation13 + $0x198] sm:$0xff]
        %v1259 = vld [vmem:[#allocation13 + $0x1a0] sm:$0xff]
        %v1260 = vld [vmem:[#allocation13 + $0x1a8] sm:$0xff]
        %v1261 = vld [vmem:[#allocation13 + $0x1b0] sm:$0xff]
        %v1262 = vld [vmem:[#allocation13 + $0x1b8] sm:$0xff]
        %v1263 = vld [vmem:[#allocation13 + $0x1c0] sm:$0xff]
        %v1264 = vld [vmem:[#allocation13 + $0x1c8] sm:$0xff]
        %v1265 = vld [vmem:[#allocation13 + $0x1d0] sm:$0xff]
        %v1266 = vld [vmem:[#allocation13 + $0x1d8] sm:$0xff]
        %v1267 = vld [vmem:[#allocation13 + $0x1e0] sm:$0xff]
        %v1268 = vld [vmem:[#allocation13 + $0x1e8] sm:$0xff]
        %v1269 = vld [vmem:[#allocation13 + $0x1f0] sm:$0xff]
        %v1270 = vld [vmem:[#allocation13 + $0x1f8] sm:$0xff]
        %1271 = vmatpush.msra.mxu0 %v1237
        %1272 = vmatpush.msra.mxu0 %v1235
        %1273 = vmatpush.msra.mxu0 %v1233
        %1274 = vmatpush.msra.mxu0 %v1231
        %1275 = vmatpush.msra.mxu0 %v1229
        %1276 = vmatpush.msra.mxu0 %v1227
        %1277 = vmatpush.msra.mxu0 %v1225
        %1278 = vmatpush.msra.mxu0 %v1223
        %1279 = vmatpush.msra.mxu0 %v1221
        %1280 = vmatpush.msra.mxu0 %v1219
        %1281 = vmatpush.msra.mxu0 %v1217
        %1282 = vmatpush.msra.mxu0 %v1215
        %1283 = vmatpush.msra.mxu0 %v1213
        %1284 = vmatpush.msra.mxu0 %v1211
        %1285 = vmatpush.msra.mxu0 %v1209
        %1286 = vmatpush.msra.mxu0 %v1207
        %1287 = vmatmul.f32.gmra.mxu0 %v1043
        %v1288 = vpop.f32.mrf.mxu0
        %v1289 = vadd.f32 0.0, %v1288
        %1290 = vmatmul.f32.gmra.mxu0 %v1045
        %v1291 = vpop.f32.mrf.mxu0
        %v1292 = vadd.f32 0.0, %v1291
        %1293 = vdwg.mxu0
        %1294 = vmatpush.msra.mxu0 %v1269
        %1295 = vmatpush.msra.mxu0 %v1267
        %1296 = vmatpush.msra.mxu0 %v1265
        %1297 = vmatpush.msra.mxu0 %v1263
        %1298 = vmatpush.msra.mxu0 %v1261
        %1299 = vmatpush.msra.mxu0 %v1259
        %1300 = vmatpush.msra.mxu0 %v1257
        %1301 = vmatpush.msra.mxu0 %v1255
        %1302 = vmatpush.msra.mxu0 %v1253
        %1303 = vmatpush.msra.mxu0 %v1251
        %1304 = vmatpush.msra.mxu0 %v1249
        %1305 = vmatpush.msra.mxu0 %v1247
        %1306 = vmatpush.msra.mxu0 %v1245
        %1307 = vmatpush.msra.mxu0 %v1243
        %1308 = vmatpush.msra.mxu0 %v1241
        %1309 = vmatpush.msra.mxu0 %v1239
        %1310 = vmatmul.f32.gmra.mxu0 %v1044
        %v1311 = vpop.f32.mrf.mxu0
        %v1312 = vadd.f32 %v1289, %v1311
        %1313 = vmatmul.f32.gmra.mxu0 %v1046
        %v1314 = vpop.f32.mrf.mxu0
        %v1315 = vadd.f32 %v1292, %v1314
        %1316 = vdwg.mxu0
        %1317 = vmatpush.msra.mxu0 %v1238
        %1318 = vmatpush.msra.mxu0 %v1236
        %1319 = vmatpush.msra.mxu0 %v1234
        %1320 = vmatpush.msra.mxu0 %v1232
        %1321 = vmatpush.msra.mxu0 %v1230
        %1322 = vmatpush.msra.mxu0 %v1228
        %1323 = vmatpush.msra.mxu0 %v1226
        %1324 = vmatpush.msra.mxu0 %v1224
        %1325 = vmatpush.msra.mxu0 %v1222
        %1326 = vmatpush.msra.mxu0 %v1220
        %1327 = vmatpush.msra.mxu0 %v1218
        %1328 = vmatpush.msra.mxu0 %v1216
        %1329 = vmatpush.msra.mxu0 %v1214
        %1330 = vmatpush.msra.mxu0 %v1212
        %1331 = vmatpush.msra.mxu0 %v1210
        %1332 = vmatpush.msra.mxu0 %v1208
        %1333 = vmatmul.f32.gmra.mxu0 %v1043
        %v1334 = vpop.f32.mrf.mxu0
        %v1335 = vadd.f32 0.0, %v1334
        %1336 = vmatmul.f32.gmra.mxu0 %v1045
        %v1337 = vpop.f32.mrf.mxu0
        %v1338 = vadd.f32 0.0, %v1337
        %1339 = vdwg.mxu0
        %1340 = vmatpush.msra.mxu0 %v1270
        %1341 = vmatpush.msra.mxu0 %v1268
        %1342 = vmatpush.msra.mxu0 %v1266
        %1343 = vmatpush.msra.mxu0 %v1264
        %1344 = vmatpush.msra.mxu0 %v1262
        %1345 = vmatpush.msra.mxu0 %v1260
        %1346 = vmatpush.msra.mxu0 %v1258
        %1347 = vmatpush.msra.mxu0 %v1256
        %1348 = vmatpush.msra.mxu0 %v1254
        %1349 = vmatpush.msra.mxu0 %v1252
        %1350 = vmatpush.msra.mxu0 %v1250
        %1351 = vmatpush.msra.mxu0 %v1248
        %1352 = vmatpush.msra.mxu0 %v1246
        %1353 = vmatpush.msra.mxu0 %v1244
        %1354 = vmatpush.msra.mxu0 %v1242
        %1355 = vmatpush.msra.mxu0 %v1240
        %1356 = vmatmul.f32.gmra.mxu0 %v1044
        %v1357 = vpop.f32.mrf.mxu0
        %v1358 = vadd.f32 %v1335, %v1357
        %1359 = vmatmul.f32.gmra.mxu0 %v1046
        %v1360 = vpop.f32.mrf.mxu0
        %v1361 = vadd.f32 %v1338, %v1360
        %1362 = vdwg.mxu0
        %1363 = vst [vmem:[%s622] sm:$0xff] %v1312
        %1364 = vst [vmem:[%s622 + $0x8] sm:$0xff] %v1358
        %1365 = vst [vmem:[%s622 + $0x10] sm:$0xff] %v1315
        %1366 = vst [vmem:[%s622 + $0x18] sm:$0xff] %v1361
        %v1367 = vld [vmem:[#allocation14] sm:$0xff]
        %v1368 = vld [vmem:[#allocation14 + $0x8] sm:$0xff]
        %v1369 = vld [vmem:[#allocation14 + $0x10] sm:$0xff]
        %v1370 = vld [vmem:[#allocation14 + $0x18] sm:$0xff]
        %v1371 = vld [vmem:[#allocation14 + $0x20] sm:$0xff]
        %v1372 = vld [vmem:[#allocation14 + $0x28] sm:$0xff]
        %v1373 = vld [vmem:[#allocation14 + $0x30] sm:$0xff]
        %v1374 = vld [vmem:[#allocation14 + $0x38] sm:$0xff]
        %v1375 = vld [vmem:[#allocation14 + $0x40] sm:$0xff]
        %v1376 = vld [vmem:[#allocation14 + $0x48] sm:$0xff]
        %v1377 = vld [vmem:[#allocation14 + $0x50] sm:$0xff]
        %v1378 = vld [vmem:[#allocation14 + $0x58] sm:$0xff]
        %v1379 = vld [vmem:[#allocation14 + $0x60] sm:$0xff]
        %v1380 = vld [vmem:[#allocation14 + $0x68] sm:$0xff]
        %v1381 = vld [vmem:[#allocation14 + $0x70] sm:$0xff]
        %v1382 = vld [vmem:[#allocation14 + $0x78] sm:$0xff]
        %v1383 = vld [vmem:[#allocation14 + $0x80] sm:$0xff]
        %v1384 = vld [vmem:[#allocation14 + $0x88] sm:$0xff]
        %v1385 = vld [vmem:[#allocation14 + $0x90] sm:$0xff]
        %v1386 = vld [vmem:[#allocation14 + $0x98] sm:$0xff]
        %v1387 = vld [vmem:[#allocation14 + $0xa0] sm:$0xff]
        %v1388 = vld [vmem:[#allocation14 + $0xa8] sm:$0xff]
        %v1389 = vld [vmem:[#allocation14 + $0xb0] sm:$0xff]
        %v1390 = vld [vmem:[#allocation14 + $0xb8] sm:$0xff]
        %v1391 = vld [vmem:[#allocation14 + $0xc0] sm:$0xff]
        %v1392 = vld [vmem:[#allocation14 + $0xc8] sm:$0xff]
        %v1393 = vld [vmem:[#allocation14 + $0xd0] sm:$0xff]
        %v1394 = vld [vmem:[#allocation14 + $0xd8] sm:$0xff]
        %v1395 = vld [vmem:[#allocation14 + $0xe0] sm:$0xff]
        %v1396 = vld [vmem:[#allocation14 + $0xe8] sm:$0xff]
        %v1397 = vld [vmem:[#allocation14 + $0xf0] sm:$0xff]
        %v1398 = vld [vmem:[#allocation14 + $0xf8] sm:$0xff]
        %v1399 = vld [vmem:[#allocation14 + $0x100] sm:$0xff]
        %v1400 = vld [vmem:[#allocation14 + $0x108] sm:$0xff]
        %v1401 = vld [vmem:[#allocation14 + $0x110] sm:$0xff]
        %v1402 = vld [vmem:[#allocation14 + $0x118] sm:$0xff]
        %v1403 = vld [vmem:[#allocation14 + $0x120] sm:$0xff]
        %v1404 = vld [vmem:[#allocation14 + $0x128] sm:$0xff]
        %v1405 = vld [vmem:[#allocation14 + $0x130] sm:$0xff]
        %v1406 = vld [vmem:[#allocation14 + $0x138] sm:$0xff]
        %v1407 = vld [vmem:[#allocation14 + $0x140] sm:$0xff]
        %v1408 = vld [vmem:[#allocation14 + $0x148] sm:$0xff]
        %v1409 = vld [vmem:[#allocation14 + $0x150] sm:$0xff]
        %v1410 = vld [vmem:[#allocation14 + $0x158] sm:$0xff]
        %v1411 = vld [vmem:[#allocation14 + $0x160] sm:$0xff]
        %v1412 = vld [vmem:[#allocation14 + $0x168] sm:$0xff]
        %v1413 = vld [vmem:[#allocation14 + $0x170] sm:$0xff]
        %v1414 = vld [vmem:[#allocation14 + $0x178] sm:$0xff]
        %v1415 = vld [vmem:[#allocation14 + $0x180] sm:$0xff]
        %v1416 = vld [vmem:[#allocation14 + $0x188] sm:$0xff]
        %v1417 = vld [vmem:[#allocation14 + $0x190] sm:$0xff]
        %v1418 = vld [vmem:[#allocation14 + $0x198] sm:$0xff]
        %v1419 = vld [vmem:[#allocation14 + $0x1a0] sm:$0xff]
        %v1420 = vld [vmem:[#allocation14 + $0x1a8] sm:$0xff]
        %v1421 = vld [vmem:[#allocation14 + $0x1b0] sm:$0xff]
        %v1422 = vld [vmem:[#allocation14 + $0x1b8] sm:$0xff]
        %v1423 = vld [vmem:[#allocation14 + $0x1c0] sm:$0xff]
        %v1424 = vld [vmem:[#allocation14 + $0x1c8] sm:$0xff]
        %v1425 = vld [vmem:[#allocation14 + $0x1d0] sm:$0xff]
        %v1426 = vld [vmem:[#allocation14 + $0x1d8] sm:$0xff]
        %v1427 = vld [vmem:[#allocation14 + $0x1e0] sm:$0xff]
        %v1428 = vld [vmem:[#allocation14 + $0x1e8] sm:$0xff]
        %v1429 = vld [vmem:[#allocation14 + $0x1f0] sm:$0xff]
        %v1430 = vld [vmem:[#allocation14 + $0x1f8] sm:$0xff]
        %1431 = vmatpush.msra.mxu0 %v1397
        %1432 = vmatpush.msra.mxu0 %v1395
        %1433 = vmatpush.msra.mxu0 %v1393
        %1434 = vmatpush.msra.mxu0 %v1391
        %1435 = vmatpush.msra.mxu0 %v1389
        %1436 = vmatpush.msra.mxu0 %v1387
        %1437 = vmatpush.msra.mxu0 %v1385
        %1438 = vmatpush.msra.mxu0 %v1383
        %1439 = vmatpush.msra.mxu0 %v1381
        %1440 = vmatpush.msra.mxu0 %v1379
        %1441 = vmatpush.msra.mxu0 %v1377
        %1442 = vmatpush.msra.mxu0 %v1375
        %1443 = vmatpush.msra.mxu0 %v1373
        %1444 = vmatpush.msra.mxu0 %v1371
        %1445 = vmatpush.msra.mxu0 %v1369
        %1446 = vmatpush.msra.mxu0 %v1367
        %1447 = vmatmul.f32.gmra.mxu0 %v1043
        %v1448 = vpop.f32.mrf.mxu0
        %v1449 = vadd.f32 0.0, %v1448
        %1450 = vmatmul.f32.gmra.mxu0 %v1045
        %v1451 = vpop.f32.mrf.mxu0
        %v1452 = vadd.f32 0.0, %v1451
        %1453 = vdwg.mxu0
        %1454 = vmatpush.msra.mxu0 %v1429
        %1455 = vmatpush.msra.mxu0 %v1427
        %1456 = vmatpush.msra.mxu0 %v1425
        %1457 = vmatpush.msra.mxu0 %v1423
        %1458 = vmatpush.msra.mxu0 %v1421
        %1459 = vmatpush.msra.mxu0 %v1419
        %1460 = vmatpush.msra.mxu0 %v1417
        %1461 = vmatpush.msra.mxu0 %v1415
        %1462 = vmatpush.msra.mxu0 %v1413
        %1463 = vmatpush.msra.mxu0 %v1411
        %1464 = vmatpush.msra.mxu0 %v1409
        %1465 = vmatpush.msra.mxu0 %v1407
        %1466 = vmatpush.msra.mxu0 %v1405
        %1467 = vmatpush.msra.mxu0 %v1403
        %1468 = vmatpush.msra.mxu0 %v1401
        %1469 = vmatpush.msra.mxu0 %v1399
        %1470 = vmatmul.f32.gmra.mxu0 %v1044
        %v1471 = vpop.f32.mrf.mxu0
        %v1472 = vadd.f32 %v1449, %v1471
        %1473 = vmatmul.f32.gmra.mxu0 %v1046
        %v1474 = vpop.f32.mrf.mxu0
        %v1475 = vadd.f32 %v1452, %v1474
        %1476 = vdwg.mxu0
        %1477 = vmatpush.msra.mxu0 %v1398
        %1478 = vmatpush.msra.mxu0 %v1396
        %1479 = vmatpush.msra.mxu0 %v1394
        %1480 = vmatpush.msra.mxu0 %v1392
        %1481 = vmatpush.msra.mxu0 %v1390
        %1482 = vmatpush.msra.mxu0 %v1388
        %1483 = vmatpush.msra.mxu0 %v1386
        %1484 = vmatpush.msra.mxu0 %v1384
        %1485 = vmatpush.msra.mxu0 %v1382
        %1486 = vmatpush.msra.mxu0 %v1380
        %1487 = vmatpush.msra.mxu0 %v1378
        %1488 = vmatpush.msra.mxu0 %v1376
        %1489 = vmatpush.msra.mxu0 %v1374
        %1490 = vmatpush.msra.mxu0 %v1372
        %1491 = vmatpush.msra.mxu0 %v1370
        %1492 = vmatpush.msra.mxu0 %v1368
        %1493 = vmatmul.f32.gmra.mxu0 %v1043
        %v1494 = vpop.f32.mrf.mxu0
        %v1495 = vadd.f32 0.0, %v1494
        %1496 = vmatmul.f32.gmra.mxu0 %v1045
        %v1497 = vpop.f32.mrf.mxu0
        %v1498 = vadd.f32 0.0, %v1497
        %1499 = vdwg.mxu0
        %1500 = vmatpush.msra.mxu0 %v1430
        %1501 = vmatpush.msra.mxu0 %v1428
        %1502 = vmatpush.msra.mxu0 %v1426
        %1503 = vmatpush.msra.mxu0 %v1424
        %1504 = vmatpush.msra.mxu0 %v1422
        %1505 = vmatpush.msra.mxu0 %v1420
        %1506 = vmatpush.msra.mxu0 %v1418
        %1507 = vmatpush.msra.mxu0 %v1416
        %1508 = vmatpush.msra.mxu0 %v1414
        %1509 = vmatpush.msra.mxu0 %v1412
        %1510 = vmatpush.msra.mxu0 %v1410
        %1511 = vmatpush.msra.mxu0 %v1408
        %1512 = vmatpush.msra.mxu0 %v1406
        %1513 = vmatpush.msra.mxu0 %v1404
        %1514 = vmatpush.msra.mxu0 %v1402
        %1515 = vmatpush.msra.mxu0 %v1400
        %1516 = vmatmul.f32.gmra.mxu0 %v1044
        %v1517 = vpop.f32.mrf.mxu0
        %v1518 = vadd.f32 %v1495, %v1517
        %1519 = vmatmul.f32.gmra.mxu0 %v1046
        %v1520 = vpop.f32.mrf.mxu0
        %v1521 = vadd.f32 %v1498, %v1520
        %1522 = vdwg.mxu0
        %1523 = vst [vmem:[%s629] sm:$0xff] %v1472
        %1524 = vst [vmem:[%s629 + $0x8] sm:$0xff] %v1518
        %1525 = vst [vmem:[%s629 + $0x10] sm:$0xff] %v1475
        %1526 = vst [vmem:[%s629 + $0x18] sm:$0xff] %v1521
        %s1527 = sand.u32 %s271, 1
        %s1528 = scalar_lea.sflag [#allocation4], %s1527
        %s1529 = sand.u32 %s271, 1
        %s1530 = smul.addr %s1529, 32
        %s1531 = scalar_lea.vmem [#allocation16], %s1530
        %s1532 = sand.u32 %s43, 1
        %s1533 = scalar_lea.sflag [#allocation18], %s1532
        %s1534 = sand.u32 %s297, 1
        %s1535 = smul.addr %s1534, 32
        %s1536 = scalar_lea.vmem [#allocation17], %s1535
        %s1537 = sand.u32 %s43, 1
        %s1538 = scalar_lea.sflag [#allocation18], %s1537
        %s1539 = sand.u32 %s323, 1
        %s1540 = smul.addr %s1539, 32
        %s1541 = scalar_lea.vmem [#allocation19], %s1540
        %s1542 = sand.u32 %s349, 1
        %s1543 = scalar_lea.sflag [#allocation21], %s1542
        %s1544 = sand.u32 %s349, 1
        %s1545 = smul.addr %s1544, 32
        %s1546 = scalar_lea.vmem [#allocation20], %s1545
        // Predicated region
        $region93: #{tpu_custom_call.1} parent=59 // pred_check
          %p1547 = pneg %p281
        $region94: #{tpu_custom_call.1} parent=59 // pred_check_branch
          %1549 = sbr.rel (%p1547) target = $region96
        $region95: #{tpu_custom_call.1} parent=59 // pred_region
          %s1550 = smul.u32 2, %s43
          %1552 = vsyncadd %s1528, 0
          %s1553 = smul.addr %s1550, 2
          %s1554 = smul.addr %s1553, 8
          %s1555 = scalar_lea.hbm %s10, %s1554
          %s1556 = sshll.u32 %s1531, 4
          %s1557 = int_to_ptr.vmem [resolvable:$true] %s1556
          %s1558 = sshll.u32 %s1555, 4
          %s1559 = int_to_ptr.hbm [resolvable:$true] %s1558
          %1564 = dma.vmem_to_hbm [thread:$0]  %s1557, 512, %s1559, %s1528, 256, 256, 16
        $region96: #{tpu_custom_call.1} parent=59 // pred_fallthru
          _
        // Predicated region
        $region97: #{tpu_custom_call.1} parent=59 // pred_check
          %p1565 = pneg %p307
        $region98: #{tpu_custom_call.1} parent=59 // pred_check_branch
          %1567 = sbr.rel (%p1565) target = $region100
        $region99: #{tpu_custom_call.1} parent=59 // pred_region
          %s1568 = smul.u32 2, %s43
          %1570 = vsyncadd %s1533, 0
          %s1571 = smul.addr %s1568, 2
          %s1572 = smul.addr %s1571, 8
          %s1573 = scalar_lea.hbm %s11, %s1572
          %s1574 = sshll.u32 %s1536, 4
          %s1575 = int_to_ptr.vmem [resolvable:$true] %s1574
          %s1576 = sshll.u32 %s1573, 4
          %s1577 = int_to_ptr.hbm [resolvable:$true] %s1576
          %1582 = dma.vmem_to_hbm [thread:$0]  %s1575, 512, %s1577, %s1533, 256, 256, 16
        $region100: #{tpu_custom_call.1} parent=59 // pred_fallthru
          _
        // Predicated region
        $region101: #{tpu_custom_call.1} parent=59 // pred_check
          %p1583 = pneg %p333
        $region102: #{tpu_custom_call.1} parent=59 // pred_check_branch
          %1585 = sbr.rel (%p1583) target = $region104
        $region103: #{tpu_custom_call.1} parent=59 // pred_region
          %s1586 = smul.u32 2, %s43
          %1588 = vsyncadd %s1538, 0
          %s1589 = smul.addr %s1586, 2
          %s1590 = smul.addr %s1589, 8
          %s1591 = scalar_lea.hbm %s12, %s1590
          %s1592 = sshll.u32 %s1541, 4
          %s1593 = int_to_ptr.vmem [resolvable:$true] %s1592
          %s1594 = sshll.u32 %s1591, 4
          %s1595 = int_to_ptr.hbm [resolvable:$true] %s1594
          %1600 = dma.vmem_to_hbm [thread:$0]  %s1593, 512, %s1595, %s1538, 256, 256, 16
        $region104: #{tpu_custom_call.1} parent=59 // pred_fallthru
          _
        // Predicated region
        $region105: #{tpu_custom_call.1} parent=59 // pred_check
          %p1601 = pneg %p359
        $region106: #{tpu_custom_call.1} parent=59 // pred_check_branch
          %1603 = sbr.rel (%p1601) target = $region108
        $region107: #{tpu_custom_call.1} parent=59 // pred_region
          %s1604 = smul.u32 2, %s43
          %1606 = vsyncadd %s1543, 0
          %s1607 = smul.addr %s1604, 2
          %s1608 = smul.addr %s1607, 8
          %s1609 = scalar_lea.hbm %s13, %s1608
          %s1610 = sshll.u32 %s1546, 4
          %s1611 = int_to_ptr.vmem [resolvable:$true] %s1610
          %s1612 = sshll.u32 %s1609, 4
          %s1613 = int_to_ptr.hbm [resolvable:$true] %s1612
          %1618 = dma.vmem_to_hbm [thread:$0]  %s1611, 512, %s1613, %s1543, 256, 256, 16
        $region108: #{tpu_custom_call.1} parent=59 // pred_fallthru
          _
      $region60: #{tpu_custom_call.1} parent=5 // pred_fallthru
        _
      %p1619 = scmp.le.s32.totalorder 2, %s38
      // Predicated region
      $region109: #{tpu_custom_call.1} parent=5 // pred_check
        %p1620 = pneg %p1619
      $region110: #{tpu_custom_call.1} parent=5 // pred_check_branch
        %1622 = sbr.rel (%p1620) target = $region112
      $region111: #{tpu_custom_call.1} parent=5 // pred_region
        %s1623 = ssub.s32 %s38, 2
        // Predicated region
        $region113: #{tpu_custom_call.1} parent=111 // pred_check
          %p1624 = pneg %p287
        $region114: #{tpu_custom_call.1} parent=111 // pred_check_branch
          %1626 = sbr.rel (%p1624) target = $region116
        $region115: #{tpu_custom_call.1} parent=111 // pred_region
          %s1627 = sand.u32 %s272, 1
          %s1628 = scalar_lea.sflag [#allocation4], %s1627
          %s1629 = sand.u32 %s272, 1
          %s1630 = smul.addr %s1629, 32
          %s1631 = scalar_lea.vmem [#allocation16], %s1630
          %1633 = dma.done %s1628, 512
        $region116: #{tpu_custom_call.1} parent=111 // pred_fallthru
          _
        // Predicated region
        $region117: #{tpu_custom_call.1} parent=111 // pred_check
          %p1634 = pneg %p313
        $region118: #{tpu_custom_call.1} parent=111 // pred_check_branch
          %1636 = sbr.rel (%p1634) target = $region120
        $region119: #{tpu_custom_call.1} parent=111 // pred_region
          %s1637 = sand.u32 %s44, 1
          %s1638 = scalar_lea.sflag [#allocation18], %s1637
          %s1639 = sand.u32 %s298, 1
          %s1640 = smul.addr %s1639, 32
          %s1641 = scalar_lea.vmem [#allocation17], %s1640
          %1643 = dma.done %s1638, 512
        $region120: #{tpu_custom_call.1} parent=111 // pred_fallthru
          _
        // Predicated region
        $region121: #{tpu_custom_call.1} parent=111 // pred_check
          %p1644 = pneg %p339
        $region122: #{tpu_custom_call.1} parent=111 // pred_check_branch
          %1646 = sbr.rel (%p1644) target = $region124
        $region123: #{tpu_custom_call.1} parent=111 // pred_region
          %s1647 = sand.u32 %s44, 1
          %s1648 = scalar_lea.sflag [#allocation18], %s1647
          %s1649 = sand.u32 %s324, 1
          %s1650 = smul.addr %s1649, 32
          %s1651 = scalar_lea.vmem [#allocation19], %s1650
          %1653 = dma.done %s1648, 512
        $region124: #{tpu_custom_call.1} parent=111 // pred_fallthru
          _
        // Predicated region
        $region125: #{tpu_custom_call.1} parent=111 // pred_check
          %p1654 = pneg %p365
        $region126: #{tpu_custom_call.1} parent=111 // pred_check_branch
          %1656 = sbr.rel (%p1654) target = $region128
        $region127: #{tpu_custom_call.1} parent=111 // pred_region
          %s1657 = sand.u32 %s350, 1
          %s1658 = scalar_lea.sflag [#allocation21], %s1657
          %s1659 = sand.u32 %s350, 1
          %s1660 = smul.addr %s1659, 32
          %s1661 = scalar_lea.vmem [#allocation20], %s1660
          %1663 = dma.done %s1658, 512
        $region128: #{tpu_custom_call.1} parent=111 // pred_fallthru
          _
      $region112: #{tpu_custom_call.1} parent=5 // pred_fallthru
        _
    $region6: #{tpu_custom_call.1} parent=1 // loop_footer
      %s42 = sadd.s32 1, %s38
    $region7: #{tpu_custom_call.1} parent=1 // loop_footer_branch
      %37 = sbr.rel target = $region3
    $region8: #{tpu_custom_call.1} parent=1 // loop_exit
      _
    %1664 = vsyncpa [#allocation3], 1
    %s1665 = scalar_lea.sflag [#allocation3], 1
    %1666 = vsyncpa %s1665, 1
    %1667 = vsyncpa [#allocation6], 1
    %s1668 = scalar_lea.sflag [#allocation6], 1
    %1669 = vsyncpa %s1668, 1
    %1670 = vsyncpa [#allocation9], 1
    %1671 = vsyncpa [#allocation12], 1
    %1672 = vsyncpa [#allocation15], 1
    %1673 = vsyncpa [#allocation4], 1
    %s1674 = scalar_lea.sflag [#allocation4], 1
    %1675 = vsyncpa %s1674, 1
    %1676 = vsyncpa [#allocation18], 1
    %s1677 = scalar_lea.sflag [#allocation18], 1
    %1678 = vsyncpa %s1677, 1
    %1679 = vsyncpa [#allocation21], 1
    %s1680 = scalar_lea.sflag [#allocation21], 1
    %1681 = vsyncpa %s1680, 1

</llo_original>
